<compile_context>
chip_gen: v5e
topology: v5e:2x2
jax: 0.10.0
libtpu: 0.0.40
codegen_flags: <defaults>
</compile_context>

<pallas_src>
import jax
import jax.numpy as jnp
from jax.experimental import pallas as pl
from jax.experimental.pallas import tpu as pltpu


def _round_up(n, m=128):
    return ((n + m - 1) // m) * m


def _char_lstm_seq_kernel(x_ref, h0_ref, c0_ref,
                          wih_ref, whh_ref, bg_ref, wfc_ref, bfc_ref,
                          logits_ref, h_out_ref, c_out_ref,
                          xproj_sc, hs_sc):
    """Whole-sequence LSTMCell recurrence + FC head for one batch block."""
    Bb, Hp = h0_ref.shape                    # batch block, padded hidden
    TB = xproj_sc.shape[0]                   # T * Bb
    T = TB // Bb

    # Hoisted input projection for ALL timesteps: one big GEMM off the
    # recurrence critical path.  x_ref is (1, T*Bb, Ip).
    xproj_sc[...] = (jnp.dot(x_ref[0], wih_ref[...],
                             preferred_element_type=jnp.float32)
                     + bg_ref[...])

    whh = whh_ref[...]                       # keep W_hh in vregs across steps

    def step(t, carry):
        h_prev, c_prev = carry
        r0 = pl.multiple_of(t * Bb, Bb)      # sublane-aligned row offset
        # Serial path per step: only the (Bb, Hp) @ (Hp, 4Hp) recurrence GEMM.
        gates = (jnp.dot(h_prev, whh, preferred_element_type=jnp.float32)
                 + xproj_sc[pl.ds(r0, Bb), :])
        # Hp is a multiple of 128 -> each gate slice is vreg-aligned.
        i_g = jax.nn.sigmoid(gates[:, 0 * Hp:1 * Hp])
        f_g = jax.nn.sigmoid(gates[:, 1 * Hp:2 * Hp])
        g_g = jnp.tanh(gates[:, 2 * Hp:3 * Hp])
        o_g = jax.nn.sigmoid(gates[:, 3 * Hp:4 * Hp])
        c_next = f_g * c_prev + i_g * g_g
        h_next = o_g * jnp.tanh(c_next)
        hs_sc[pl.ds(r0, Bb), :] = h_next     # stash h_t for the batched FC head
        return (h_next, c_next)

    h_T, c_T = jax.lax.fori_loop(0, T, step,
                                 (h0_ref[...], c0_ref[...]), unroll=True)

    h_out_ref[...] = h_T
    c_out_ref[...] = c_T
    # Batched FC head over all (t, b) rows: one (T*Bb, Hp) @ (Hp, Op) GEMM,
    # written back lane-dense in a single store.
    logits_ref[0] = (jnp.dot(hs_sc[...], wfc_ref[...],
                             preferred_element_type=jnp.float32)
                     + bfc_ref[...])


def char_lstm_sequence(x_seq, states, packed, *, batch_block=8):
    """Run the LSTMCell + FC head over a whole (batched) sequence in ONE call.

    Args:
      x_seq:  (T, input_size) or (T, B, input_size) float array.
      states: (h0, c0), each (B, hidden_size) (or (1, hidden_size)).
      packed: output of pack_params().

    Returns:
      (logits, (h_T, c_T)); logits is (T, output_size) or (T, B, output_size).
    """
    h0, c0 = states
    I, H, O = packed["sizes"]
    Ip, Hp, Op = packed["padded"]

    x_seq = jnp.asarray(x_seq, jnp.float32)
    squeeze_batch = (x_seq.ndim == 2)
    if squeeze_batch:
        x_seq = x_seq[:, None, :]
    T, B, _ = x_seq.shape

    h0 = jnp.asarray(h0, jnp.float32).reshape(B, H)
    c0 = jnp.asarray(c0, jnp.float32).reshape(B, H)

    Bblk = batch_block                       # multiple of 8 (sublane count)
    Bp = _round_up(B, Bblk)
    nb = Bp // Bblk

    # Zero-pad features/batch; arrange x as (nb, T*Bblk, Ip) so each batch
    # block is one resident, lane-dense VMEM slab (layout plumbing in JAX).
    x_pad = jnp.zeros((T, Bp, Ip), jnp.float32).at[:, :B, :I].set(x_seq)
    x_p = (x_pad.reshape(T, nb, Bblk, Ip)
           .transpose(1, 0, 2, 3).reshape(nb, T * Bblk, Ip))
    h0_p = jnp.zeros((Bp, Hp), jnp.float32).at[:B, :H].set(h0)
    c0_p = jnp.zeros((Bp, Hp), jnp.float32).at[:B, :H].set(c0)

    grid_spec = pltpu.PrefetchScalarGridSpec(
        num_scalar_prefetch=0,
        grid=(nb,),                                            # batch blocks
        in_specs=[
            pl.BlockSpec((1, T * Bblk, Ip), lambda b: (b, 0, 0)),   # x block
            pl.BlockSpec((Bblk, Hp), lambda b: (b, 0)),             # h0
            pl.BlockSpec((Bblk, Hp), lambda b: (b, 0)),             # c0
            pl.BlockSpec((Ip, 4 * Hp), lambda b: (0, 0)),           # W_ih
            pl.BlockSpec((Hp, 4 * Hp), lambda b: (0, 0)),           # W_hh
            pl.BlockSpec((1, 4 * Hp), lambda b: (0, 0)),            # b_gates
            pl.BlockSpec((Hp, Op), lambda b: (0, 0)),               # W_fc
            pl.BlockSpec((1, Op), lambda b: (0, 0)),                # b_fc
        ],
        out_specs=(
            pl.BlockSpec((1, T * Bblk, Op), lambda b: (b, 0, 0)),   # logits
            pl.BlockSpec((Bblk, Hp), lambda b: (b, 0)),             # h_T
            pl.BlockSpec((Bblk, Hp), lambda b: (b, 0)),             # c_T
        ),
        scratch_shapes=[
            pltpu.VMEM((T * Bblk, 4 * Hp), jnp.float32),   # hoisted Xproj
            pltpu.VMEM((T * Bblk, Hp), jnp.float32),       # per-step h stash
        ],
    )

    logits_p, h_p, c_p = pl.pallas_call(
        _char_lstm_seq_kernel,
        out_shape=(
            jax.ShapeDtypeStruct((nb, T * Bblk, Op), jnp.float32),
            jax.ShapeDtypeStruct((Bp, Hp), jnp.float32),
            jax.ShapeDtypeStruct((Bp, Hp), jnp.float32),
        ),
        grid_spec=grid_spec,
        compiler_params=pltpu.CompilerParams(
            dimension_semantics=("parallel",),       # batch blocks -> 2 TCs on v7x
            vmem_limit_bytes=32 * 1024 * 1024),
    )(x_p, h0_p, c0_p,
      packed["w_ih"], packed["w_hh"], packed["b_gates"],
      packed["w_fc"], packed["b_fc"])

    logits = (logits_p.reshape(nb, T, Bblk, Op)
              .transpose(1, 0, 2, 3).reshape(T, Bp, Op))[:, :B, :O]
    h_T = h_p[:B, :H]
    c_T = c_p[:B, :H]
    if squeeze_batch:
        logits = logits[:, 0, :]
    return logits, (h_T, c_T)


def char_lstm_forward(x, states, packed):
    """Exact CharLSTM.forward semantics: one step, returns (logits.t(), (h, c))."""
    logits, (h, c) = char_lstm_sequence(jnp.reshape(x, (1, -1)), states, packed)
    return logits.T, (h, c)    # (output_size, 1)


def init_params(key, input_size, hidden_size, output_size):
    """PyTorch-style uniform(-1/sqrt(H), 1/sqrt(H)) init, PyTorch layouts."""
    ks = jax.random.split(key, 6)
    bound = 1.0 / jnp.sqrt(jnp.float32(hidden_size))

    def u(k, shape):
        return jax.random.uniform(k, shape, jnp.float32, -bound, bound)

    return {
        "w_ih": u(ks[0], (4 * hidden_size, input_size)),   # (4H, I)
        "w_hh": u(ks[1], (4 * hidden_size, hidden_size)),  # (4H, H)
        "b_ih": u(ks[2], (4 * hidden_size,)),
        "b_hh": u(ks[3], (4 * hidden_size,)),
        "w_fc": u(ks[4], (output_size, hidden_size)),      # (O, H)
        "b_fc": u(ks[5], (output_size,)),
    }


def pack_params(raw, input_size, hidden_size, output_size):
    """Transpose + zero-pad weights into the lane-dense kernel layout.

    Gate k (order [i, f, g, o]) occupies padded columns [k*Hp, k*Hp + H).
    Padded gate lanes get weight/bias 0, so sigmoid(0)=0.5 / tanh(0)=0 keep
    padded h/c lanes exactly zero through the recurrence.
    """
    I, H, O = input_size, hidden_size, output_size
    Ip, Hp, Op = _round_up(I), _round_up(H), _round_up(O)

    w_ih_t = raw["w_ih"].T            # (I, 4H)
    w_hh_t = raw["w_hh"].T            # (H, 4H)
    b = raw["b_ih"] + raw["b_hh"]     # (4H,)

    w_ih_p = jnp.zeros((Ip, 4 * Hp), jnp.float32)
    w_hh_p = jnp.zeros((Hp, 4 * Hp), jnp.float32)
    b_gates = jnp.zeros((1, 4 * Hp), jnp.float32)
    for k in range(4):
        w_ih_p = w_ih_p.at[:I, k * Hp:k * Hp + H].set(w_ih_t[:, k * H:(k + 1) * H])
        w_hh_p = w_hh_p.at[:H, k * Hp:k * Hp + H].set(w_hh_t[:, k * H:(k + 1) * H])
        b_gates = b_gates.at[0, k * Hp:k * Hp + H].set(b[k * H:(k + 1) * H])

    w_fc = jnp.zeros((Hp, Op), jnp.float32).at[:H, :O].set(raw["w_fc"].T)
    b_fc = jnp.zeros((1, Op), jnp.float32).at[0, :O].set(raw["b_fc"])

    return {
        "w_ih": w_ih_p, "w_hh": w_hh_p, "b_gates": b_gates,
        "w_fc": w_fc, "b_fc": b_fc,
        "sizes": (I, H, O), "padded": (Ip, Hp, Op),
    }


def _reference_sequence(x_seq, states, raw):
    """Pure-JAX CharLSTM applied stepwise (matches PyTorch LSTMCell math)."""
    def step(carry, x):
        h, c = carry
        gates = (x @ raw["w_ih"].T + raw["b_ih"]
                 + h @ raw["w_hh"].T + raw["b_hh"])
        i, f, g, o = jnp.split(gates, 4, axis=-1)
        c = jax.nn.sigmoid(f) * c + jax.nn.sigmoid(i) * jnp.tanh(g)
        h = jax.nn.sigmoid(o) * jnp.tanh(c)
        logits = h @ raw["w_fc"].T + raw["b_fc"]
        return (h, c), logits

    (h, c), logits = jax.lax.scan(step, states, x_seq)
    return logits, (h, c)


if __name__ == "__main__":
    input_size, hidden_size, output_size = 16, 32, 16
    seq_len, batch = 8, 4

    key = jax.random.PRNGKey(0)
    k_x, k_h, k_c, k_p = jax.random.split(key, 4)

    x_seq = jax.random.normal(k_x, (seq_len, batch, input_size), jnp.float32)
    h0 = jax.random.normal(k_h, (batch, hidden_size), jnp.float32)
    c0 = jax.random.normal(k_c, (batch, hidden_size), jnp.float32)

    raw = init_params(k_p, input_size, hidden_size, output_size)
    packed = pack_params(raw, input_size, hidden_size, output_size)

    # Whole batched sequence in one fused kernel call (the fast path).
    logits, (h_T, c_T) = char_lstm_sequence(x_seq, (h0, c0), packed)
    jax.block_until_ready((logits, h_T, c_T))
    assert logits.shape == (seq_len, batch, output_size)
    assert h_T.shape == (batch, hidden_size) and c_T.shape == (batch, hidden_size)

    # Numerical check vs a pure-JAX reference of the PyTorch module semantics.
    ref_logits, (ref_h, ref_c) = _reference_sequence(x_seq, (h0, c0), raw)
    assert jnp.allclose(logits, ref_logits, atol=1e-3, rtol=1e-3)
    assert jnp.allclose(h_T, ref_h, atol=1e-3, rtol=1e-3)
    assert jnp.allclose(c_T, ref_c, atol=1e-3, rtol=1e-3)

    # Single-step API with the exact CharLSTM.forward signature/shapes.
    logits_t, (h1, c1) = char_lstm_forward(x_seq[0, 0], (h0[:1], c0[:1]), packed)
    jax.block_until_ready((logits_t, h1, c1))
    assert logits_t.shape == (output_size, 1)
    assert h1.shape == (1, hidden_size) and c1.shape == (1, hidden_size)
    assert jnp.allclose(logits_t[:, 0], ref_logits[0, 0], atol=1e-3, rtol=1e-3)

    print("KERNEL_OK")
</pallas_src>

<mosaic_0001>
module attributes {stable_mosaic.version = 11 : i64} {
  func.func @_char_lstm_seq_kernel(%arg0: i32, %arg1: memref<1x64x128xf32, #tpu.memory_space<vmem>>, %arg2: memref<8x128xf32, #tpu.memory_space<vmem>>, %arg3: memref<8x128xf32, #tpu.memory_space<vmem>>, %arg4: memref<128x512xf32, #tpu.memory_space<vmem>>, %arg5: memref<128x512xf32, #tpu.memory_space<vmem>>, %arg6: memref<1x512xf32, #tpu.memory_space<vmem>>, %arg7: memref<128x128xf32, #tpu.memory_space<vmem>>, %arg8: memref<1x128xf32, #tpu.memory_space<vmem>>, %arg9: memref<1x64x128xf32, #tpu.memory_space<vmem>>, %arg10: memref<8x128xf32, #tpu.memory_space<vmem>>, %arg11: memref<8x128xf32, #tpu.memory_space<vmem>>, %arg12: memref<64x512xf32, #tpu.memory_space<vmem>>, %arg13: memref<64x128xf32, #tpu.memory_space<vmem>>) attributes {dimension_semantics = [#tpu.dimension_semantics<parallel>], iteration_bounds = array<i64: 1>, scalar_prefetch = 0 : i64, scratch_operands = 2 : i64, tpu.core_type = #tpu.core_type<tc>, window_params = [{transform_indices = @transform_0, window_bounds = array<i64: 1, 64, 128>}, {transform_indices = @transform_1, window_bounds = array<i64: 8, 128>}, {transform_indices = @transform_2, window_bounds = array<i64: 8, 128>}, {pipeline_mode = #tpu.pipeline_mode<synchronous>, transform_indices = @transform_3, window_bounds = array<i64: 128, 512>}, {pipeline_mode = #tpu.pipeline_mode<synchronous>, transform_indices = @transform_4, window_bounds = array<i64: 128, 512>}, {pipeline_mode = #tpu.pipeline_mode<synchronous>, transform_indices = @transform_5, window_bounds = array<i64: 1, 512>}, {pipeline_mode = #tpu.pipeline_mode<synchronous>, transform_indices = @transform_6, window_bounds = array<i64: 128, 128>}, {pipeline_mode = #tpu.pipeline_mode<synchronous>, transform_indices = @transform_7, window_bounds = array<i64: 1, 128>}, {transform_indices = @transform_8, window_bounds = array<i64: 1, 64, 128>}, {transform_indices = @transform_9, window_bounds = array<i64: 8, 128>}, {transform_indices = @transform_10, window_bounds = array<i64: 8, 128>}]} {
    %c0 = arith.constant 0 : index
    %c0_0 = arith.constant 0 : index
    %c0_1 = arith.constant 0 : index
    %0 = vector.load %arg1[%c0, %c0_0, %c0_1] : memref<1x64x128xf32, #tpu.memory_space<vmem>>, vector<1x64x128xf32>
    %1 = vector.shape_cast %0 : vector<1x64x128xf32> to vector<64x128xf32>
    %c0_2 = arith.constant 0 : index
    %c0_3 = arith.constant 0 : index
    %2 = vector.load %arg4[%c0_2, %c0_3] : memref<128x512xf32, #tpu.memory_space<vmem>>, vector<128x512xf32>
    %cst = arith.constant dense<0.000000e+00> : vector<64x512xf32>
    %3 = tpu.matmul %1, %2, %cst {dimension_numbers = #tpu.dot_dimension_numbers<[1], [0], [0], [1], [0, 0, 1, 1], [], []>} : vector<64x128xf32>, vector<128x512xf32>, vector<64x512xf32> -> vector<64x512xf32>
    %c0_4 = arith.constant 0 : index
    %c0_5 = arith.constant 0 : index
    %4 = vector.load %arg6[%c0_4, %c0_5] : memref<1x512xf32, #tpu.memory_space<vmem>>, vector<1x512xf32>
    %5 = vector.broadcast %4 : vector<1x512xf32> to vector<64x512xf32>
    %6 = arith.addf %3, %5 : vector<64x512xf32>
    %c0_6 = arith.constant 0 : index
    %c0_7 = arith.constant 0 : index
    %7 = vector.load %arg12[%c0_6, %c0_7] : memref<64x512xf32, #tpu.memory_space<vmem>>, vector<64x512xf32>
    tpu.vector_store %arg12[%c0_6, %c0_7], %6 {strides = array<i32>} : memref<64x512xf32, #tpu.memory_space<vmem>>, vector<64x512xf32>,
    %c0_8 = arith.constant 0 : index
    %c0_9 = arith.constant 0 : index
    %8 = vector.load %arg5[%c0_8, %c0_9] : memref<128x512xf32, #tpu.memory_space<vmem>>, vector<128x512xf32>
    %c0_10 = arith.constant 0 : index
    %c0_11 = arith.constant 0 : index
    %9 = vector.load %arg2[%c0_10, %c0_11] : memref<8x128xf32, #tpu.memory_space<vmem>>, vector<8x128xf32>
    %c0_12 = arith.constant 0 : index
    %c0_13 = arith.constant 0 : index
    %10 = vector.load %arg3[%c0_12, %c0_13] : memref<8x128xf32, #tpu.memory_space<vmem>>, vector<8x128xf32>
    %c0_i32 = arith.constant 0 : i32
    %c8_i32 = arith.constant 8 : i32
    %11 = arith.muli %c0_i32, %c8_i32 : i32
    %12 = tpu.assume_multiple %11, 8 : i32
    %cst_14 = arith.constant dense<0.000000e+00> : vector<8x512xf32>
    %13 = tpu.matmul %9, %8, %cst_14 {dimension_numbers = #tpu.dot_dimension_numbers<[1], [0], [0], [1], [0, 0, 1, 1], [], []>} : vector<8x128xf32>, vector<128x512xf32>, vector<8x512xf32> -> vector<8x512xf32>
    %14 = arith.index_cast %12 : i32 to index
    %c0_15 = arith.constant 0 : index
    %15 = vector.load %arg12[%14, %c0_15] : memref<64x512xf32, #tpu.memory_space<vmem>>, vector<8x512xf32>
    %16 = arith.addf %13, %15 : vector<8x512xf32>
    %17 = vector.extract_strided_slice %16 {offsets = [0, 0], sizes = [8, 128], strides = [1, 1]} : vector<8x512xf32> to vector<8x128xf32>
    %18 = arith.negf %17 : vector<8x128xf32>
    %19 = math.exp %18 : vector<8x128xf32>
    %cst_16 = arith.constant 1.000000e+00 : f32
    %20 = vector.broadcast %cst_16 : f32 to vector<8x128xf32>
    %21 = arith.addf %20, %19 : vector<8x128xf32>
    %22 = arith.divf %20, %21 : vector<8x128xf32>
    %23 = vector.extract_strided_slice %16 {offsets = [0, 128], sizes = [8, 128], strides = [1, 1]} : vector<8x512xf32> to vector<8x128xf32>
    %24 = arith.negf %23 : vector<8x128xf32>
    %25 = math.exp %24 : vector<8x128xf32>
    %cst_17 = arith.constant 1.000000e+00 : f32
    %26 = vector.broadcast %cst_17 : f32 to vector<8x128xf32>
    %27 = arith.addf %26, %25 : vector<8x128xf32>
    %28 = arith.divf %26, %27 : vector<8x128xf32>
    %29 = vector.extract_strided_slice %16 {offsets = [0, 256], sizes = [8, 128], strides = [1, 1]} : vector<8x512xf32> to vector<8x128xf32>
    %30 = math.tanh %29 : vector<8x128xf32>
    %31 = vector.extract_strided_slice %16 {offsets = [0, 384], sizes = [8, 128], strides = [1, 1]} : vector<8x512xf32> to vector<8x128xf32>
    %32 = arith.negf %31 : vector<8x128xf32>
    %33 = math.exp %32 : vector<8x128xf32>
    %cst_18 = arith.constant 1.000000e+00 : f32
    %34 = vector.broadcast %cst_18 : f32 to vector<8x128xf32>
    %35 = arith.addf %34, %33 : vector<8x128xf32>
    %36 = arith.divf %34, %35 : vector<8x128xf32>
    %37 = arith.mulf %28, %10 : vector<8x128xf32>
    %38 = arith.mulf %22, %30 : vector<8x128xf32>
    %39 = arith.addf %37, %38 : vector<8x128xf32>
    %40 = math.tanh %39 : vector<8x128xf32>
    %41 = arith.mulf %36, %40 : vector<8x128xf32>
    %42 = arith.index_cast %12 : i32 to index
    %c0_19 = arith.constant 0 : index
    %43 = vector.load %arg13[%42, %c0_19] : memref<64x128xf32, #tpu.memory_space<vmem>>, vector<8x128xf32>
    tpu.vector_store %arg13[%42, %c0_19], %41 {strides = array<i32>} : memref<64x128xf32, #tpu.memory_space<vmem>>, vector<8x128xf32>,
    %c1_i32 = arith.constant 1 : i32
    %c8_i32_20 = arith.constant 8 : i32
    %44 = arith.muli %c1_i32, %c8_i32_20 : i32
    %45 = tpu.assume_multiple %44, 8 : i32
    %cst_21 = arith.constant dense<0.000000e+00> : vector<8x512xf32>
    %46 = tpu.matmul %41, %8, %cst_21 {dimension_numbers = #tpu.dot_dimension_numbers<[1], [0], [0], [1], [0, 0, 1, 1], [], []>} : vector<8x128xf32>, vector<128x512xf32>, vector<8x512xf32> -> vector<8x512xf32>
    %47 = arith.index_cast %45 : i32 to index
    %c0_22 = arith.constant 0 : index
    %48 = vector.load %arg12[%47, %c0_22] : memref<64x512xf32, #tpu.memory_space<vmem>>, vector<8x512xf32>
    %49 = arith.addf %46, %48 : vector<8x512xf32>
    %50 = vector.extract_strided_slice %49 {offsets = [0, 0], sizes = [8, 128], strides = [1, 1]} : vector<8x512xf32> to vector<8x128xf32>
    %51 = arith.negf %50 : vector<8x128xf32>
    %52 = math.exp %51 : vector<8x128xf32>
    %cst_23 = arith.constant 1.000000e+00 : f32
    %53 = vector.broadcast %cst_23 : f32 to vector<8x128xf32>
    %54 = arith.addf %53, %52 : vector<8x128xf32>
    %55 = arith.divf %53, %54 : vector<8x128xf32>
    %56 = vector.extract_strided_slice %49 {offsets = [0, 128], sizes = [8, 128], strides = [1, 1]} : vector<8x512xf32> to vector<8x128xf32>
    %57 = arith.negf %56 : vector<8x128xf32>
    %58 = math.exp %57 : vector<8x128xf32>
    %cst_24 = arith.constant 1.000000e+00 : f32
    %59 = vector.broadcast %cst_24 : f32 to vector<8x128xf32>
    %60 = arith.addf %59, %58 : vector<8x128xf32>
    %61 = arith.divf %59, %60 : vector<8x128xf32>
    %62 = vector.extract_strided_slice %49 {offsets = [0, 256], sizes = [8, 128], strides = [1, 1]} : vector<8x512xf32> to vector<8x128xf32>
    %63 = math.tanh %62 : vector<8x128xf32>
    %64 = vector.extract_strided_slice %49 {offsets = [0, 384], sizes = [8, 128], strides = [1, 1]} : vector<8x512xf32> to vector<8x128xf32>
    %65 = arith.negf %64 : vector<8x128xf32>
    %66 = math.exp %65 : vector<8x128xf32>
    %cst_25 = arith.constant 1.000000e+00 : f32
    %67 = vector.broadcast %cst_25 : f32 to vector<8x128xf32>
    %68 = arith.addf %67, %66 : vector<8x128xf32>
    %69 = arith.divf %67, %68 : vector<8x128xf32>
    %70 = arith.mulf %61, %39 : vector<8x128xf32>
    %71 = arith.mulf %55, %63 : vector<8x128xf32>
    %72 = arith.addf %70, %71 : vector<8x128xf32>
    %73 = math.tanh %72 : vector<8x128xf32>
    %74 = arith.mulf %69, %73 : vector<8x128xf32>
    %75 = arith.index_cast %45 : i32 to index
    %c0_26 = arith.constant 0 : index
    %76 = vector.load %arg13[%75, %c0_26] : memref<64x128xf32, #tpu.memory_space<vmem>>, vector<8x128xf32>
    tpu.vector_store %arg13[%75, %c0_26], %74 {strides = array<i32>} : memref<64x128xf32, #tpu.memory_space<vmem>>, vector<8x128xf32>,
    %c2_i32 = arith.constant 2 : i32
    %c8_i32_27 = arith.constant 8 : i32
    %77 = arith.muli %c2_i32, %c8_i32_27 : i32
    %78 = tpu.assume_multiple %77, 8 : i32
    %cst_28 = arith.constant dense<0.000000e+00> : vector<8x512xf32>
    %79 = tpu.matmul %74, %8, %cst_28 {dimension_numbers = #tpu.dot_dimension_numbers<[1], [0], [0], [1], [0, 0, 1, 1], [], []>} : vector<8x128xf32>, vector<128x512xf32>, vector<8x512xf32> -> vector<8x512xf32>
    %80 = arith.index_cast %78 : i32 to index
    %c0_29 = arith.constant 0 : index
    %81 = vector.load %arg12[%80, %c0_29] : memref<64x512xf32, #tpu.memory_space<vmem>>, vector<8x512xf32>
    %82 = arith.addf %79, %81 : vector<8x512xf32>
    %83 = vector.extract_strided_slice %82 {offsets = [0, 0], sizes = [8, 128], strides = [1, 1]} : vector<8x512xf32> to vector<8x128xf32>
    %84 = arith.negf %83 : vector<8x128xf32>
    %85 = math.exp %84 : vector<8x128xf32>
    %cst_30 = arith.constant 1.000000e+00 : f32
    %86 = vector.broadcast %cst_30 : f32 to vector<8x128xf32>
    %87 = arith.addf %86, %85 : vector<8x128xf32>
    %88 = arith.divf %86, %87 : vector<8x128xf32>
    %89 = vector.extract_strided_slice %82 {offsets = [0, 128], sizes = [8, 128], strides = [1, 1]} : vector<8x512xf32> to vector<8x128xf32>
    %90 = arith.negf %89 : vector<8x128xf32>
    %91 = math.exp %90 : vector<8x128xf32>
    %cst_31 = arith.constant 1.000000e+00 : f32
    %92 = vector.broadcast %cst_31 : f32 to vector<8x128xf32>
    %93 = arith.addf %92, %91 : vector<8x128xf32>
    %94 = arith.divf %92, %93 : vector<8x128xf32>
    %95 = vector.extract_strided_slice %82 {offsets = [0, 256], sizes = [8, 128], strides = [1, 1]} : vector<8x512xf32> to vector<8x128xf32>
    %96 = math.tanh %95 : vector<8x128xf32>
    %97 = vector.extract_strided_slice %82 {offsets = [0, 384], sizes = [8, 128], strides = [1, 1]} : vector<8x512xf32> to vector<8x128xf32>
    %98 = arith.negf %97 : vector<8x128xf32>
    %99 = math.exp %98 : vector<8x128xf32>
    %cst_32 = arith.constant 1.000000e+00 : f32
    %100 = vector.broadcast %cst_32 : f32 to vector<8x128xf32>
    %101 = arith.addf %100, %99 : vector<8x128xf32>
    %102 = arith.divf %100, %101 : vector<8x128xf32>
    %103 = arith.mulf %94, %72 : vector<8x128xf32>
    %104 = arith.mulf %88, %96 : vector<8x128xf32>
    %105 = arith.addf %103, %104 : vector<8x128xf32>
    %106 = math.tanh %105 : vector<8x128xf32>
    %107 = arith.mulf %102, %106 : vector<8x128xf32>
    %108 = arith.index_cast %78 : i32 to index
    %c0_33 = arith.constant 0 : index
    %109 = vector.load %arg13[%108, %c0_33] : memref<64x128xf32, #tpu.memory_space<vmem>>, vector<8x128xf32>
    tpu.vector_store %arg13[%108, %c0_33], %107 {strides = array<i32>} : memref<64x128xf32, #tpu.memory_space<vmem>>, vector<8x128xf32>,
    %c3_i32 = arith.constant 3 : i32
    %c8_i32_34 = arith.constant 8 : i32
    %110 = arith.muli %c3_i32, %c8_i32_34 : i32
    %111 = tpu.assume_multiple %110, 8 : i32
    %cst_35 = arith.constant dense<0.000000e+00> : vector<8x512xf32>
    %112 = tpu.matmul %107, %8, %cst_35 {dimension_numbers = #tpu.dot_dimension_numbers<[1], [0], [0], [1], [0, 0, 1, 1], [], []>} : vector<8x128xf32>, vector<128x512xf32>, vector<8x512xf32> -> vector<8x512xf32>
    %113 = arith.index_cast %111 : i32 to index
    %c0_36 = arith.constant 0 : index
    %114 = vector.load %arg12[%113, %c0_36] : memref<64x512xf32, #tpu.memory_space<vmem>>, vector<8x512xf32>
    %115 = arith.addf %112, %114 : vector<8x512xf32>
    %116 = vector.extract_strided_slice %115 {offsets = [0, 0], sizes = [8, 128], strides = [1, 1]} : vector<8x512xf32> to vector<8x128xf32>
    %117 = arith.negf %116 : vector<8x128xf32>
    %118 = math.exp %117 : vector<8x128xf32>
    %cst_37 = arith.constant 1.000000e+00 : f32
    %119 = vector.broadcast %cst_37 : f32 to vector<8x128xf32>
    %120 = arith.addf %119, %118 : vector<8x128xf32>
    %121 = arith.divf %119, %120 : vector<8x128xf32>
    %122 = vector.extract_strided_slice %115 {offsets = [0, 128], sizes = [8, 128], strides = [1, 1]} : vector<8x512xf32> to vector<8x128xf32>
    %123 = arith.negf %122 : vector<8x128xf32>
    %124 = math.exp %123 : vector<8x128xf32>
    %cst_38 = arith.constant 1.000000e+00 : f32
    %125 = vector.broadcast %cst_38 : f32 to vector<8x128xf32>
    %126 = arith.addf %125, %124 : vector<8x128xf32>
    %127 = arith.divf %125, %126 : vector<8x128xf32>
    %128 = vector.extract_strided_slice %115 {offsets = [0, 256], sizes = [8, 128], strides = [1, 1]} : vector<8x512xf32> to vector<8x128xf32>
    %129 = math.tanh %128 : vector<8x128xf32>
    %130 = vector.extract_strided_slice %115 {offsets = [0, 384], sizes = [8, 128], strides = [1, 1]} : vector<8x512xf32> to vector<8x128xf32>
    %131 = arith.negf %130 : vector<8x128xf32>
    %132 = math.exp %131 : vector<8x128xf32>
    %cst_39 = arith.constant 1.000000e+00 : f32
    %133 = vector.broadcast %cst_39 : f32 to vector<8x128xf32>
    %134 = arith.addf %133, %132 : vector<8x128xf32>
    %135 = arith.divf %133, %134 : vector<8x128xf32>
    %136 = arith.mulf %127, %105 : vector<8x128xf32>
    %137 = arith.mulf %121, %129 : vector<8x128xf32>
    %138 = arith.addf %136, %137 : vector<8x128xf32>
    %139 = math.tanh %138 : vector<8x128xf32>
    %140 = arith.mulf %135, %139 : vector<8x128xf32>
    %141 = arith.index_cast %111 : i32 to index
    %c0_40 = arith.constant 0 : index
    %142 = vector.load %arg13[%141, %c0_40] : memref<64x128xf32, #tpu.memory_space<vmem>>, vector<8x128xf32>
    tpu.vector_store %arg13[%141, %c0_40], %140 {strides = array<i32>} : memref<64x128xf32, #tpu.memory_space<vmem>>, vector<8x128xf32>,
    %c4_i32 = arith.constant 4 : i32
    %c8_i32_41 = arith.constant 8 : i32
    %143 = arith.muli %c4_i32, %c8_i32_41 : i32
    %144 = tpu.assume_multiple %143, 8 : i32
    %cst_42 = arith.constant dense<0.000000e+00> : vector<8x512xf32>
    %145 = tpu.matmul %140, %8, %cst_42 {dimension_numbers = #tpu.dot_dimension_numbers<[1], [0], [0], [1], [0, 0, 1, 1], [], []>} : vector<8x128xf32>, vector<128x512xf32>, vector<8x512xf32> -> vector<8x512xf32>
    %146 = arith.index_cast %144 : i32 to index
    %c0_43 = arith.constant 0 : index
    %147 = vector.load %arg12[%146, %c0_43] : memref<64x512xf32, #tpu.memory_space<vmem>>, vector<8x512xf32>
    %148 = arith.addf %145, %147 : vector<8x512xf32>
    %149 = vector.extract_strided_slice %148 {offsets = [0, 0], sizes = [8, 128], strides = [1, 1]} : vector<8x512xf32> to vector<8x128xf32>
    %150 = arith.negf %149 : vector<8x128xf32>
    %151 = math.exp %150 : vector<8x128xf32>
    %cst_44 = arith.constant 1.000000e+00 : f32
    %152 = vector.broadcast %cst_44 : f32 to vector<8x128xf32>
    %153 = arith.addf %152, %151 : vector<8x128xf32>
    %154 = arith.divf %152, %153 : vector<8x128xf32>
    %155 = vector.extract_strided_slice %148 {offsets = [0, 128], sizes = [8, 128], strides = [1, 1]} : vector<8x512xf32> to vector<8x128xf32>
    %156 = arith.negf %155 : vector<8x128xf32>
    %157 = math.exp %156 : vector<8x128xf32>
    %cst_45 = arith.constant 1.000000e+00 : f32
    %158 = vector.broadcast %cst_45 : f32 to vector<8x128xf32>
    %159 = arith.addf %158, %157 : vector<8x128xf32>
    %160 = arith.divf %158, %159 : vector<8x128xf32>
    %161 = vector.extract_strided_slice %148 {offsets = [0, 256], sizes = [8, 128], strides = [1, 1]} : vector<8x512xf32> to vector<8x128xf32>
    %162 = math.tanh %161 : vector<8x128xf32>
    %163 = vector.extract_strided_slice %148 {offsets = [0, 384], sizes = [8, 128], strides = [1, 1]} : vector<8x512xf32> to vector<8x128xf32>
    %164 = arith.negf %163 : vector<8x128xf32>
    %165 = math.exp %164 : vector<8x128xf32>
    %cst_46 = arith.constant 1.000000e+00 : f32
    %166 = vector.broadcast %cst_46 : f32 to vector<8x128xf32>
    %167 = arith.addf %166, %165 : vector<8x128xf32>
    %168 = arith.divf %166, %167 : vector<8x128xf32>
    %169 = arith.mulf %160, %138 : vector<8x128xf32>
    %170 = arith.mulf %154, %162 : vector<8x128xf32>
    %171 = arith.addf %169, %170 : vector<8x128xf32>
    %172 = math.tanh %171 : vector<8x128xf32>
    %173 = arith.mulf %168, %172 : vector<8x128xf32>
    %174 = arith.index_cast %144 : i32 to index
    %c0_47 = arith.constant 0 : index
    %175 = vector.load %arg13[%174, %c0_47] : memref<64x128xf32, #tpu.memory_space<vmem>>, vector<8x128xf32>
    tpu.vector_store %arg13[%174, %c0_47], %173 {strides = array<i32>} : memref<64x128xf32, #tpu.memory_space<vmem>>, vector<8x128xf32>,
    %c5_i32 = arith.constant 5 : i32
    %c8_i32_48 = arith.constant 8 : i32
    %176 = arith.muli %c5_i32, %c8_i32_48 : i32
    %177 = tpu.assume_multiple %176, 8 : i32
    %cst_49 = arith.constant dense<0.000000e+00> : vector<8x512xf32>
    %178 = tpu.matmul %173, %8, %cst_49 {dimension_numbers = #tpu.dot_dimension_numbers<[1], [0], [0], [1], [0, 0, 1, 1], [], []>} : vector<8x128xf32>, vector<128x512xf32>, vector<8x512xf32> -> vector<8x512xf32>
    %179 = arith.index_cast %177 : i32 to index
    %c0_50 = arith.constant 0 : index
    %180 = vector.load %arg12[%179, %c0_50] : memref<64x512xf32, #tpu.memory_space<vmem>>, vector<8x512xf32>
    %181 = arith.addf %178, %180 : vector<8x512xf32>
    %182 = vector.extract_strided_slice %181 {offsets = [0, 0], sizes = [8, 128], strides = [1, 1]} : vector<8x512xf32> to vector<8x128xf32>
    %183 = arith.negf %182 : vector<8x128xf32>
    %184 = math.exp %183 : vector<8x128xf32>
    %cst_51 = arith.constant 1.000000e+00 : f32
    %185 = vector.broadcast %cst_51 : f32 to vector<8x128xf32>
    %186 = arith.addf %185, %184 : vector<8x128xf32>
    %187 = arith.divf %185, %186 : vector<8x128xf32>
    %188 = vector.extract_strided_slice %181 {offsets = [0, 128], sizes = [8, 128], strides = [1, 1]} : vector<8x512xf32> to vector<8x128xf32>
    %189 = arith.negf %188 : vector<8x128xf32>
    %190 = math.exp %189 : vector<8x128xf32>
    %cst_52 = arith.constant 1.000000e+00 : f32
    %191 = vector.broadcast %cst_52 : f32 to vector<8x128xf32>
    %192 = arith.addf %191, %190 : vector<8x128xf32>
    %193 = arith.divf %191, %192 : vector<8x128xf32>
    %194 = vector.extract_strided_slice %181 {offsets = [0, 256], sizes = [8, 128], strides = [1, 1]} : vector<8x512xf32> to vector<8x128xf32>
    %195 = math.tanh %194 : vector<8x128xf32>
    %196 = vector.extract_strided_slice %181 {offsets = [0, 384], sizes = [8, 128], strides = [1, 1]} : vector<8x512xf32> to vector<8x128xf32>
    %197 = arith.negf %196 : vector<8x128xf32>
    %198 = math.exp %197 : vector<8x128xf32>
    %cst_53 = arith.constant 1.000000e+00 : f32
    %199 = vector.broadcast %cst_53 : f32 to vector<8x128xf32>
    %200 = arith.addf %199, %198 : vector<8x128xf32>
    %201 = arith.divf %199, %200 : vector<8x128xf32>
    %202 = arith.mulf %193, %171 : vector<8x128xf32>
    %203 = arith.mulf %187, %195 : vector<8x128xf32>
    %204 = arith.addf %202, %203 : vector<8x128xf32>
    %205 = math.tanh %204 : vector<8x128xf32>
    %206 = arith.mulf %201, %205 : vector<8x128xf32>
    %207 = arith.index_cast %177 : i32 to index
    %c0_54 = arith.constant 0 : index
    %208 = vector.load %arg13[%207, %c0_54] : memref<64x128xf32, #tpu.memory_space<vmem>>, vector<8x128xf32>
    tpu.vector_store %arg13[%207, %c0_54], %206 {strides = array<i32>} : memref<64x128xf32, #tpu.memory_space<vmem>>, vector<8x128xf32>,
    %c6_i32 = arith.constant 6 : i32
    %c8_i32_55 = arith.constant 8 : i32
    %209 = arith.muli %c6_i32, %c8_i32_55 : i32
    %210 = tpu.assume_multiple %209, 8 : i32
    %cst_56 = arith.constant dense<0.000000e+00> : vector<8x512xf32>
    %211 = tpu.matmul %206, %8, %cst_56 {dimension_numbers = #tpu.dot_dimension_numbers<[1], [0], [0], [1], [0, 0, 1, 1], [], []>} : vector<8x128xf32>, vector<128x512xf32>, vector<8x512xf32> -> vector<8x512xf32>
    %212 = arith.index_cast %210 : i32 to index
    %c0_57 = arith.constant 0 : index
    %213 = vector.load %arg12[%212, %c0_57] : memref<64x512xf32, #tpu.memory_space<vmem>>, vector<8x512xf32>
    %214 = arith.addf %211, %213 : vector<8x512xf32>
    %215 = vector.extract_strided_slice %214 {offsets = [0, 0], sizes = [8, 128], strides = [1, 1]} : vector<8x512xf32> to vector<8x128xf32>
    %216 = arith.negf %215 : vector<8x128xf32>
    %217 = math.exp %216 : vector<8x128xf32>
    %cst_58 = arith.constant 1.000000e+00 : f32
    %218 = vector.broadcast %cst_58 : f32 to vector<8x128xf32>
    %219 = arith.addf %218, %217 : vector<8x128xf32>
    %220 = arith.divf %218, %219 : vector<8x128xf32>
    %221 = vector.extract_strided_slice %214 {offsets = [0, 128], sizes = [8, 128], strides = [1, 1]} : vector<8x512xf32> to vector<8x128xf32>
    %222 = arith.negf %221 : vector<8x128xf32>
    %223 = math.exp %222 : vector<8x128xf32>
    %cst_59 = arith.constant 1.000000e+00 : f32
    %224 = vector.broadcast %cst_59 : f32 to vector<8x128xf32>
    %225 = arith.addf %224, %223 : vector<8x128xf32>
    %226 = arith.divf %224, %225 : vector<8x128xf32>
    %227 = vector.extract_strided_slice %214 {offsets = [0, 256], sizes = [8, 128], strides = [1, 1]} : vector<8x512xf32> to vector<8x128xf32>
    %228 = math.tanh %227 : vector<8x128xf32>
    %229 = vector.extract_strided_slice %214 {offsets = [0, 384], sizes = [8, 128], strides = [1, 1]} : vector<8x512xf32> to vector<8x128xf32>
    %230 = arith.negf %229 : vector<8x128xf32>
    %231 = math.exp %230 : vector<8x128xf32>
    %cst_60 = arith.constant 1.000000e+00 : f32
    %232 = vector.broadcast %cst_60 : f32 to vector<8x128xf32>
    %233 = arith.addf %232, %231 : vector<8x128xf32>
    %234 = arith.divf %232, %233 : vector<8x128xf32>
    %235 = arith.mulf %226, %204 : vector<8x128xf32>
    %236 = arith.mulf %220, %228 : vector<8x128xf32>
    %237 = arith.addf %235, %236 : vector<8x128xf32>
    %238 = math.tanh %237 : vector<8x128xf32>
    %239 = arith.mulf %234, %238 : vector<8x128xf32>
    %240 = arith.index_cast %210 : i32 to index
    %c0_61 = arith.constant 0 : index
    %241 = vector.load %arg13[%240, %c0_61] : memref<64x128xf32, #tpu.memory_space<vmem>>, vector<8x128xf32>
    tpu.vector_store %arg13[%240, %c0_61], %239 {strides = array<i32>} : memref<64x128xf32, #tpu.memory_space<vmem>>, vector<8x128xf32>,
    %c7_i32 = arith.constant 7 : i32
    %c8_i32_62 = arith.constant 8 : i32
    %242 = arith.muli %c7_i32, %c8_i32_62 : i32
    %243 = tpu.assume_multiple %242, 8 : i32
    %cst_63 = arith.constant dense<0.000000e+00> : vector<8x512xf32>
    %244 = tpu.matmul %239, %8, %cst_63 {dimension_numbers = #tpu.dot_dimension_numbers<[1], [0], [0], [1], [0, 0, 1, 1], [], []>} : vector<8x128xf32>, vector<128x512xf32>, vector<8x512xf32> -> vector<8x512xf32>
    %245 = arith.index_cast %243 : i32 to index
    %c0_64 = arith.constant 0 : index
    %246 = vector.load %arg12[%245, %c0_64] : memref<64x512xf32, #tpu.memory_space<vmem>>, vector<8x512xf32>
    %247 = arith.addf %244, %246 : vector<8x512xf32>
    %248 = vector.extract_strided_slice %247 {offsets = [0, 0], sizes = [8, 128], strides = [1, 1]} : vector<8x512xf32> to vector<8x128xf32>
    %249 = arith.negf %248 : vector<8x128xf32>
    %250 = math.exp %249 : vector<8x128xf32>
    %cst_65 = arith.constant 1.000000e+00 : f32
    %251 = vector.broadcast %cst_65 : f32 to vector<8x128xf32>
    %252 = arith.addf %251, %250 : vector<8x128xf32>
    %253 = arith.divf %251, %252 : vector<8x128xf32>
    %254 = vector.extract_strided_slice %247 {offsets = [0, 128], sizes = [8, 128], strides = [1, 1]} : vector<8x512xf32> to vector<8x128xf32>
    %255 = arith.negf %254 : vector<8x128xf32>
    %256 = math.exp %255 : vector<8x128xf32>
    %cst_66 = arith.constant 1.000000e+00 : f32
    %257 = vector.broadcast %cst_66 : f32 to vector<8x128xf32>
    %258 = arith.addf %257, %256 : vector<8x128xf32>
    %259 = arith.divf %257, %258 : vector<8x128xf32>
    %260 = vector.extract_strided_slice %247 {offsets = [0, 256], sizes = [8, 128], strides = [1, 1]} : vector<8x512xf32> to vector<8x128xf32>
    %261 = math.tanh %260 : vector<8x128xf32>
    %262 = vector.extract_strided_slice %247 {offsets = [0, 384], sizes = [8, 128], strides = [1, 1]} : vector<8x512xf32> to vector<8x128xf32>
    %263 = arith.negf %262 : vector<8x128xf32>
    %264 = math.exp %263 : vector<8x128xf32>
    %cst_67 = arith.constant 1.000000e+00 : f32
    %265 = vector.broadcast %cst_67 : f32 to vector<8x128xf32>
    %266 = arith.addf %265, %264 : vector<8x128xf32>
    %267 = arith.divf %265, %266 : vector<8x128xf32>
    %268 = arith.mulf %259, %237 : vector<8x128xf32>
    %269 = arith.mulf %253, %261 : vector<8x128xf32>
    %270 = arith.addf %268, %269 : vector<8x128xf32>
    %271 = math.tanh %270 : vector<8x128xf32>
    %272 = arith.mulf %267, %271 : vector<8x128xf32>
    %273 = arith.index_cast %243 : i32 to index
    %c0_68 = arith.constant 0 : index
    %274 = vector.load %arg13[%273, %c0_68] : memref<64x128xf32, #tpu.memory_space<vmem>>, vector<8x128xf32>
    tpu.vector_store %arg13[%273, %c0_68], %272 {strides = array<i32>} : memref<64x128xf32, #tpu.memory_space<vmem>>, vector<8x128xf32>,
    %c8_i32_69 = arith.constant 8 : i32
    %c0_70 = arith.constant 0 : index
    %c0_71 = arith.constant 0 : index
    %275 = vector.load %arg10[%c0_70, %c0_71] : memref<8x128xf32, #tpu.memory_space<vmem>>, vector<8x128xf32>
    tpu.vector_store %arg10[%c0_70, %c0_71], %272 {strides = array<i32>} : memref<8x128xf32, #tpu.memory_space<vmem>>, vector<8x128xf32>,
    %c0_72 = arith.constant 0 : index
    %c0_73 = arith.constant 0 : index
    %276 = vector.load %arg11[%c0_72, %c0_73] : memref<8x128xf32, #tpu.memory_space<vmem>>, vector<8x128xf32>
    tpu.vector_store %arg11[%c0_72, %c0_73], %270 {strides = array<i32>} : memref<8x128xf32, #tpu.memory_space<vmem>>, vector<8x128xf32>,
    %c0_74 = arith.constant 0 : index
    %c0_75 = arith.constant 0 : index
    %277 = vector.load %arg13[%c0_74, %c0_75] : memref<64x128xf32, #tpu.memory_space<vmem>>, vector<64x128xf32>
    %c0_76 = arith.constant 0 : index
    %c0_77 = arith.constant 0 : index
    %278 = vector.load %arg7[%c0_76, %c0_77] : memref<128x128xf32, #tpu.memory_space<vmem>>, vector<128x128xf32>
    %cst_78 = arith.constant dense<0.000000e+00> : vector<64x128xf32>
    %279 = tpu.matmul %277, %278, %cst_78 {dimension_numbers = #tpu.dot_dimension_numbers<[1], [0], [0], [1], [0, 0, 1, 1], [], []>} : vector<64x128xf32>, vector<128x128xf32>, vector<64x128xf32> -> vector<64x128xf32>
    %c0_79 = arith.constant 0 : index
    %c0_80 = arith.constant 0 : index
    %280 = vector.load %arg8[%c0_79, %c0_80] : memref<1x128xf32, #tpu.memory_space<vmem>>, vector<1x128xf32>
    %281 = vector.broadcast %280 : vector<1x128xf32> to vector<64x128xf32>
    %282 = arith.addf %279, %281 : vector<64x128xf32>
    %c0_81 = arith.constant 0 : index
    %c0_82 = arith.constant 0 : index
    %c0_83 = arith.constant 0 : index
    %283 = vector.load %arg9[%c0_81, %c0_82, %c0_83] : memref<1x64x128xf32, #tpu.memory_space<vmem>>, vector<1x64x128xf32>
    %284 = vector.shape_cast %283 : vector<1x64x128xf32> to vector<64x128xf32>
    %285 = vector.shape_cast %282 : vector<64x128xf32> to vector<1x64x128xf32>
    tpu.vector_store %arg9[%c0_81, %c0_82, %c0_83], %285 {strides = array<i32>} : memref<1x64x128xf32, #tpu.memory_space<vmem>>, vector<1x64x128xf32>,
    return
  }
  func.func @transform_0(%arg0: i32) -> (i32, i32, i32) {
    %c0_i32 = arith.constant 0 : i32
    %c0_i32_0 = arith.constant 0 : i32
    %c0_i32_1 = arith.constant 0 : i32
    return %arg0, %c0_i32, %c0_i32_0 : i32, i32, i32
  }
  func.func @transform_1(%arg0: i32) -> (i32, i32) {
    %c0_i32 = arith.constant 0 : i32
    %c0_i32_0 = arith.constant 0 : i32
    return %arg0, %c0_i32 : i32, i32
  }
  func.func @transform_2(%arg0: i32) -> (i32, i32) {
    %c0_i32 = arith.constant 0 : i32
    %c0_i32_0 = arith.constant 0 : i32
    return %arg0, %c0_i32 : i32, i32
  }
  func.func @transform_3(%arg0: i32) -> (i32, i32) {
    %c0_i32 = arith.constant 0 : i32
    %c0_i32_0 = arith.constant 0 : i32
    %c0_i32_1 = arith.constant 0 : i32
    return %c0_i32, %c0_i32_0 : i32, i32
  }
  func.func @transform_4(%arg0: i32) -> (i32, i32) {
    %c0_i32 = arith.constant 0 : i32
    %c0_i32_0 = arith.constant 0 : i32
    %c0_i32_1 = arith.constant 0 : i32
    return %c0_i32, %c0_i32_0 : i32, i32
  }
  func.func @transform_5(%arg0: i32) -> (i32, i32) {
    %c0_i32 = arith.constant 0 : i32
    %c0_i32_0 = arith.constant 0 : i32
    %c0_i32_1 = arith.constant 0 : i32
    return %c0_i32, %c0_i32_0 : i32, i32
  }
  func.func @transform_6(%arg0: i32) -> (i32, i32) {
    %c0_i32 = arith.constant 0 : i32
    %c0_i32_0 = arith.constant 0 : i32
    %c0_i32_1 = arith.constant 0 : i32
    return %c0_i32, %c0_i32_0 : i32, i32
  }
  func.func @transform_7(%arg0: i32) -> (i32, i32) {
    %c0_i32 = arith.constant 0 : i32
    %c0_i32_0 = arith.constant 0 : i32
    %c0_i32_1 = arith.constant 0 : i32
    return %c0_i32, %c0_i32_0 : i32, i32
  }
  func.func @transform_8(%arg0: i32) -> (i32, i32, i32) {
    %c0_i32 = arith.constant 0 : i32
    %c0_i32_0 = arith.constant 0 : i32
    %c0_i32_1 = arith.constant 0 : i32
    return %arg0, %c0_i32, %c0_i32_0 : i32, i32, i32
  }
  func.func @transform_9(%arg0: i32) -> (i32, i32) {
    %c0_i32 = arith.constant 0 : i32
    %c0_i32_0 = arith.constant 0 : i32
    return %arg0, %c0_i32 : i32, i32
  }
  func.func @transform_10(%arg0: i32) -> (i32, i32) {
    %c0_i32 = arith.constant 0 : i32
    %c0_i32_0 = arith.constant 0 : i32
    return %arg0, %c0_i32 : i32, i32
  }
}

</mosaic_0001>

<llo_original>
// kernel: tpu_custom_call.1
$region0: #{tpu_custom_call.1}
  #allocation0 [shape = 'u32[]', space=smem, size = 0x4, offset = 0x4, fixed_abs, tag = 'smem constant byte address 0x4 - core index']
  #allocation1 [shape = 'u32[72,128]{1,0:T(1,128)}', space=vmem, size = 0x9000, scoped, tag = 'internal scratch']
  #allocation2 [shape = 'f32[64,512]{1,0:T(8,128)}', space=vmem, size = 0x20000, scoped, tag = 'scratch operand']
  #allocation3 [shape = 'f32[64,128]{1,0:T(8,128)}', space=vmem, size = 0x8000, scoped, tag = 'scratch operand']
  %s0 = inlined_call_operand.hbm [shape: f32[1,64,128], index: 0, kind: input, shape index: {}]
  %s1 = inlined_call_operand.hbm [shape: f32[8,128], index: 1, kind: input, shape index: {}]
  %s2 = inlined_call_operand.hbm [shape: f32[8,128], index: 2, kind: input, shape index: {}]
  %s3 = inlined_call_operand.hbm [shape: f32[128,512], index: 3, kind: input, shape index: {}]
  %s4 = inlined_call_operand.hbm [shape: f32[128,512], index: 4, kind: input, shape index: {}]
  %s5 = inlined_call_operand.vmem [shape: f32[1,512], index: 5, kind: input, shape index: {}]
  %s6 = inlined_call_operand.hbm [shape: f32[128,128], index: 6, kind: input, shape index: {}]
  %s7 = inlined_call_operand.vmem [shape: f32[1,128], index: 7, kind: input, shape index: {}]
  %s8 = inlined_call_operand.hbm [shape: f32[1,64,128], index: 8, kind: output, shape index: {0}]
  %s9 = inlined_call_operand.hbm [shape: f32[8,128], index: 9, kind: output, shape index: {1}]
  %s10 = inlined_call_operand.hbm [shape: f32[8,128], index: 10, kind: output, shape index: {2}]
  %11 = xla_tuple %s8, %s9, %s10
  %s12 = sld [smem:[#allocation0]]
  $region82: #{tpu_custom_call.1} parent=0
    _
  %s14 = ssub.s32 1, %s12
  %s15 = scalar_select 0, %s14, %s12
  $region1: #{tpu_custom_call.1} parent=0
    #allocation4 [shape = 'u8[32768]{0}', space=vmem, size = 0x8000, scoped, tag = 'input window, operand 0, single buffered']
    #allocation5 [shape = 's32[1]{0}', space=sflag, size = 0x4, scoped, tag = 'scoped memory for tpu_custom_call.1']
    #allocation6 [shape = 's32[1]{0}', space=sflag, size = 0x4, scoped, tag = 'scoped memory for tpu_custom_call.1']
    #allocation7 [shape = 'u8[4096]{0}', space=vmem, size = 0x1000, scoped, tag = 'input window, operand 1, single buffered']
    #allocation8 [shape = 's32[1]{0}', space=sflag, size = 0x4, scoped, tag = 'scoped memory for tpu_custom_call.1']
    #allocation9 [shape = 'u8[4096]{0}', space=vmem, size = 0x1000, scoped, tag = 'input window, operand 2, single buffered']
    #allocation10 [shape = 'u8[262144]{0}', space=vmem, size = 0x40000, scoped, tag = 'input window, operand 3, single buffered']
    #allocation11 [shape = 's32[1]{0}', space=sflag, size = 0x4, scoped, tag = 'scoped memory for tpu_custom_call.1']
    #allocation12 [shape = 'u8[262144]{0}', space=vmem, size = 0x40000, scoped, tag = 'input window, operand 4, single buffered']
    #allocation13 [shape = 'u8[65536]{0}', space=vmem, size = 0x10000, scoped, tag = 'input window, operand 6, single buffered']
    #allocation14 [shape = 's32[1]{0}', space=sflag, size = 0x4, scoped, tag = 'scoped memory for tpu_custom_call.1']
    #allocation15 [shape = 'u8[32768]{0}', space=vmem, size = 0x8000, scoped, tag = 'output window, operand 0, single buffered']
    #allocation16 [shape = 'u8[4096]{0}', space=vmem, size = 0x1000, scoped, tag = 'output window, operand 1, single buffered']
    #allocation17 [shape = 's32[1]{0}', space=sflag, size = 0x4, scoped, tag = 'scoped memory for tpu_custom_call.1']
    #allocation18 [shape = 'u8[4096]{0}', space=vmem, size = 0x1000, scoped, tag = 'output window, operand 2, single buffered']
    %16 = vsyncpa [#allocation5], 0
    %17 = vsyncpa [#allocation8], 0
    %18 = vsyncpa [#allocation11], 0
    %19 = vsyncpa [#allocation14], 0
    %20 = vsyncpa [#allocation6], 0
    %21 = vsyncpa [#allocation17], 0
    // Predicated region
    $region2: #{tpu_custom_call.1} parent=1 // pred_check
      _
    $region3: #{tpu_custom_call.1} parent=1 // pred_check_branch
      %23 = sbr.rel (0) target = $region5
    $region4: #{tpu_custom_call.1} parent=1 // pred_region
      %25 = vsyncadd [#allocation5], 0
      %s26 = sshll.u32 %s0, 4
      %s27 = int_to_ptr.hbm [resolvable:$true] %s26
      %s28 = sshll.u32 [#allocation4], 4
      %s29 = int_to_ptr.vmem [resolvable:$true] %s28
      %34 = dma.hbm_to_vmem [thread:$0]  %s27, 1024, %s29, [#allocation5], 128, 128, 8
    $region5: #{tpu_custom_call.1} parent=1 // pred_fallthru
      _
    // Predicated region
    $region6: #{tpu_custom_call.1} parent=1 // pred_check
      _
    $region7: #{tpu_custom_call.1} parent=1 // pred_check_branch
      %36 = sbr.rel (0) target = $region9
    $region8: #{tpu_custom_call.1} parent=1 // pred_region
      %38 = vsyncadd [#allocation8], 0
      %s40 = sshll.u32 %s1, 4
      %s41 = int_to_ptr.hbm [resolvable:$true] %s40
      %s42 = sshll.u32 [#allocation7], 4
      %s43 = int_to_ptr.vmem [resolvable:$true] %s42
      %45 = dma.hbm_to_vmem [thread:$0]  %s41, 128, %s43, [#allocation8]
    $region9: #{tpu_custom_call.1} parent=1 // pred_fallthru
      _
    // Predicated region
    $region10: #{tpu_custom_call.1} parent=1 // pred_check
      _
    $region11: #{tpu_custom_call.1} parent=1 // pred_check_branch
      %47 = sbr.rel (0) target = $region13
    $region12: #{tpu_custom_call.1} parent=1 // pred_region
      %49 = vsyncadd [#allocation8], 0
      %s51 = sshll.u32 %s2, 4
      %s52 = int_to_ptr.hbm [resolvable:$true] %s51
      %s53 = sshll.u32 [#allocation9], 4
      %s54 = int_to_ptr.vmem [resolvable:$true] %s53
      %56 = dma.hbm_to_vmem [thread:$0]  %s52, 128, %s54, [#allocation8]
    $region13: #{tpu_custom_call.1} parent=1 // pred_fallthru
      _
    // Predicated region
    $region14: #{tpu_custom_call.1} parent=1 // pred_check
      _
    $region15: #{tpu_custom_call.1} parent=1 // pred_check_branch
      %58 = sbr.rel (0) target = $region17
    $region16: #{tpu_custom_call.1} parent=1 // pred_region
      %60 = vsyncadd [#allocation11], 0
      %s61 = sshll.u32 %s3, 4
      %s62 = int_to_ptr.hbm [resolvable:$true] %s61
      %s63 = sshll.u32 [#allocation10], 4
      %s64 = int_to_ptr.vmem [resolvable:$true] %s63
      %69 = dma.hbm_to_vmem [thread:$0]  %s62, 8192, %s64, [#allocation11], 512, 512, 32
    $region17: #{tpu_custom_call.1} parent=1 // pred_fallthru
      _
    // Predicated region
    $region18: #{tpu_custom_call.1} parent=1 // pred_check
      _
    $region19: #{tpu_custom_call.1} parent=1 // pred_check_branch
      %71 = sbr.rel (0) target = $region21
    $region20: #{tpu_custom_call.1} parent=1 // pred_region
      %73 = vsyncadd [#allocation11], 0
      %s74 = sshll.u32 %s4, 4
      %s75 = int_to_ptr.hbm [resolvable:$true] %s74
      %s76 = sshll.u32 [#allocation12], 4
      %s77 = int_to_ptr.vmem [resolvable:$true] %s76
      %82 = dma.hbm_to_vmem [thread:$0]  %s75, 8192, %s77, [#allocation11], 512, 512, 32
    $region21: #{tpu_custom_call.1} parent=1 // pred_fallthru
      _
    // Predicated region
    $region22: #{tpu_custom_call.1} parent=1 // pred_check
      _
    $region23: #{tpu_custom_call.1} parent=1 // pred_check_branch
      %84 = sbr.rel (0) target = $region25
    $region24: #{tpu_custom_call.1} parent=1 // pred_region
      _
    $region25: #{tpu_custom_call.1} parent=1 // pred_fallthru
      _
    // Predicated region
    $region26: #{tpu_custom_call.1} parent=1 // pred_check
      _
    $region27: #{tpu_custom_call.1} parent=1 // pred_check_branch
      %86 = sbr.rel (0) target = $region29
    $region28: #{tpu_custom_call.1} parent=1 // pred_region
      %88 = vsyncadd [#allocation14], 0
      %s89 = sshll.u32 %s6, 4
      %s90 = int_to_ptr.hbm [resolvable:$true] %s89
      %s91 = sshll.u32 [#allocation13], 4
      %s92 = int_to_ptr.vmem [resolvable:$true] %s91
      %97 = dma.hbm_to_vmem [thread:$0]  %s90, 2048, %s92, [#allocation14], 128, 128, 8
    $region29: #{tpu_custom_call.1} parent=1 // pred_fallthru
      _
    // Predicated region
    $region30: #{tpu_custom_call.1} parent=1 // pred_check
      _
    $region31: #{tpu_custom_call.1} parent=1 // pred_check_branch
      %99 = sbr.rel (0) target = $region33
    $region32: #{tpu_custom_call.1} parent=1 // pred_region
      _
    $region33: #{tpu_custom_call.1} parent=1 // pred_fallthru
      _
    // Predicated region
    $region34: #{tpu_custom_call.1} parent=1 // pred_check
      _
    $region35: #{tpu_custom_call.1} parent=1 // pred_check_branch
      %101 = sbr.rel (0) target = $region37
    $region36: #{tpu_custom_call.1} parent=1 // pred_region
      %103 = dma.done [#allocation5], 1024
    $region37: #{tpu_custom_call.1} parent=1 // pred_fallthru
      _
    // Predicated region
    $region38: #{tpu_custom_call.1} parent=1 // pred_check
      _
    $region39: #{tpu_custom_call.1} parent=1 // pred_check_branch
      %105 = sbr.rel (0) target = $region41
    $region40: #{tpu_custom_call.1} parent=1 // pred_region
      %107 = dma.done [#allocation8], 128
    $region41: #{tpu_custom_call.1} parent=1 // pred_fallthru
      _
    // Predicated region
    $region42: #{tpu_custom_call.1} parent=1 // pred_check
      _
    $region43: #{tpu_custom_call.1} parent=1 // pred_check_branch
      %109 = sbr.rel (0) target = $region45
    $region44: #{tpu_custom_call.1} parent=1 // pred_region
      %111 = dma.done [#allocation8], 128
    $region45: #{tpu_custom_call.1} parent=1 // pred_fallthru
      _
    // Predicated region
    $region46: #{tpu_custom_call.1} parent=1 // pred_check
      _
    $region47: #{tpu_custom_call.1} parent=1 // pred_check_branch
      %113 = sbr.rel (0) target = $region49
    $region48: #{tpu_custom_call.1} parent=1 // pred_region
      %115 = dma.done [#allocation11], 8192
    $region49: #{tpu_custom_call.1} parent=1 // pred_fallthru
      _
    // Predicated region
    $region50: #{tpu_custom_call.1} parent=1 // pred_check
      _
    $region51: #{tpu_custom_call.1} parent=1 // pred_check_branch
      %117 = sbr.rel (0) target = $region53
    $region52: #{tpu_custom_call.1} parent=1 // pred_region
      %119 = dma.done [#allocation11], 8192
    $region53: #{tpu_custom_call.1} parent=1 // pred_fallthru
      _
    // Predicated region
    $region54: #{tpu_custom_call.1} parent=1 // pred_check
      _
    $region55: #{tpu_custom_call.1} parent=1 // pred_check_branch
      %121 = sbr.rel (0) target = $region57
    $region56: #{tpu_custom_call.1} parent=1 // pred_region
      %123 = dma.done [#allocation14], 2048
    $region57: #{tpu_custom_call.1} parent=1 // pred_fallthru
      _
    %v124 = vld [vmem:[#allocation4] sm:$0xff]
    %v125 = vld [vmem:[#allocation4 + $0x8] sm:$0xff]
    %v126 = vld [vmem:[#allocation4 + $0x10] sm:$0xff]
    %v127 = vld [vmem:[#allocation4 + $0x18] sm:$0xff]
    %v128 = vld [vmem:[#allocation4 + $0x20] sm:$0xff]
    %v129 = vld [vmem:[#allocation4 + $0x28] sm:$0xff]
    %v130 = vld [vmem:[#allocation4 + $0x30] sm:$0xff]
    %v131 = vld [vmem:[#allocation4 + $0x38] sm:$0xff]
    %v132 = vld [vmem:[#allocation10] sm:$0xff]
    %v133 = vld [vmem:[#allocation10 + $0x8] sm:$0xff]
    %v134 = vld [vmem:[#allocation10 + $0x10] sm:$0xff]
    %v135 = vld [vmem:[#allocation10 + $0x18] sm:$0xff]
    %v136 = vld [vmem:[#allocation10 + $0x20] sm:$0xff]
    %v137 = vld [vmem:[#allocation10 + $0x28] sm:$0xff]
    %v138 = vld [vmem:[#allocation10 + $0x30] sm:$0xff]
    %v139 = vld [vmem:[#allocation10 + $0x38] sm:$0xff]
    %v140 = vld [vmem:[#allocation10 + $0x40] sm:$0xff]
    %v141 = vld [vmem:[#allocation10 + $0x48] sm:$0xff]
    %v142 = vld [vmem:[#allocation10 + $0x50] sm:$0xff]
    %v143 = vld [vmem:[#allocation10 + $0x58] sm:$0xff]
    %v144 = vld [vmem:[#allocation10 + $0x60] sm:$0xff]
    %v145 = vld [vmem:[#allocation10 + $0x68] sm:$0xff]
    %v146 = vld [vmem:[#allocation10 + $0x70] sm:$0xff]
    %v147 = vld [vmem:[#allocation10 + $0x78] sm:$0xff]
    %v148 = vld [vmem:[#allocation10 + $0x80] sm:$0xff]
    %v149 = vld [vmem:[#allocation10 + $0x88] sm:$0xff]
    %v150 = vld [vmem:[#allocation10 + $0x90] sm:$0xff]
    %v151 = vld [vmem:[#allocation10 + $0x98] sm:$0xff]
    %v152 = vld [vmem:[#allocation10 + $0xa0] sm:$0xff]
    %v153 = vld [vmem:[#allocation10 + $0xa8] sm:$0xff]
    %v154 = vld [vmem:[#allocation10 + $0xb0] sm:$0xff]
    %v155 = vld [vmem:[#allocation10 + $0xb8] sm:$0xff]
    %v156 = vld [vmem:[#allocation10 + $0xc0] sm:$0xff]
    %v157 = vld [vmem:[#allocation10 + $0xc8] sm:$0xff]
    %v158 = vld [vmem:[#allocation10 + $0xd0] sm:$0xff]
    %v159 = vld [vmem:[#allocation10 + $0xd8] sm:$0xff]
    %v160 = vld [vmem:[#allocation10 + $0xe0] sm:$0xff]
    %v161 = vld [vmem:[#allocation10 + $0xe8] sm:$0xff]
    %v162 = vld [vmem:[#allocation10 + $0xf0] sm:$0xff]
    %v163 = vld [vmem:[#allocation10 + $0xf8] sm:$0xff]
    %v164 = vld [vmem:[#allocation10 + $0x100] sm:$0xff]
    %v165 = vld [vmem:[#allocation10 + $0x108] sm:$0xff]
    %v166 = vld [vmem:[#allocation10 + $0x110] sm:$0xff]
    %v167 = vld [vmem:[#allocation10 + $0x118] sm:$0xff]
    %v168 = vld [vmem:[#allocation10 + $0x120] sm:$0xff]
    %v169 = vld [vmem:[#allocation10 + $0x128] sm:$0xff]
    %v170 = vld [vmem:[#allocation10 + $0x130] sm:$0xff]
    %v171 = vld [vmem:[#allocation10 + $0x138] sm:$0xff]
    %v172 = vld [vmem:[#allocation10 + $0x140] sm:$0xff]
    %v173 = vld [vmem:[#allocation10 + $0x148] sm:$0xff]
    %v174 = vld [vmem:[#allocation10 + $0x150] sm:$0xff]
    %v175 = vld [vmem:[#allocation10 + $0x158] sm:$0xff]
    %v176 = vld [vmem:[#allocation10 + $0x160] sm:$0xff]
    %v177 = vld [vmem:[#allocation10 + $0x168] sm:$0xff]
    %v178 = vld [vmem:[#allocation10 + $0x170] sm:$0xff]
    %v179 = vld [vmem:[#allocation10 + $0x178] sm:$0xff]
    %v180 = vld [vmem:[#allocation10 + $0x180] sm:$0xff]
    %v181 = vld [vmem:[#allocation10 + $0x188] sm:$0xff]
    %v182 = vld [vmem:[#allocation10 + $0x190] sm:$0xff]
    %v183 = vld [vmem:[#allocation10 + $0x198] sm:$0xff]
    %v184 = vld [vmem:[#allocation10 + $0x1a0] sm:$0xff]
    %v185 = vld [vmem:[#allocation10 + $0x1a8] sm:$0xff]
    %v186 = vld [vmem:[#allocation10 + $0x1b0] sm:$0xff]
    %v187 = vld [vmem:[#allocation10 + $0x1b8] sm:$0xff]
    %v188 = vld [vmem:[#allocation10 + $0x1c0] sm:$0xff]
    %v189 = vld [vmem:[#allocation10 + $0x1c8] sm:$0xff]
    %v190 = vld [vmem:[#allocation10 + $0x1d0] sm:$0xff]
    %v191 = vld [vmem:[#allocation10 + $0x1d8] sm:$0xff]
    %v192 = vld [vmem:[#allocation10 + $0x1e0] sm:$0xff]
    %v193 = vld [vmem:[#allocation10 + $0x1e8] sm:$0xff]
    %v194 = vld [vmem:[#allocation10 + $0x1f0] sm:$0xff]
    %v195 = vld [vmem:[#allocation10 + $0x1f8] sm:$0xff]
    %v196 = vld [vmem:[%s5] sm:$0xf]
    %v198 = vperm.slane %v196, 0
    %v199 = vperm.slane %v196, 1
    %v200 = vperm.slane %v196, 2
    %v201 = vperm.slane %v196, 3
    %206 = vmatpush.msra.mxu0 %v192
    %207 = vmatpush.msra.mxu0 %v188
    %208 = vmatpush.msra.mxu0 %v184
    %209 = vmatpush.msra.mxu0 %v180
    %210 = vmatpush.msra.mxu0 %v176
    %211 = vmatpush.msra.mxu0 %v172
    %212 = vmatpush.msra.mxu0 %v168
    %213 = vmatpush.msra.mxu0 %v164
    %214 = vmatpush.msra.mxu0 %v160
    %215 = vmatpush.msra.mxu0 %v156
    %216 = vmatpush.msra.mxu0 %v152
    %217 = vmatpush.msra.mxu0 %v148
    %218 = vmatpush.msra.mxu0 %v144
    %219 = vmatpush.msra.mxu0 %v140
    %220 = vmatpush.msra.mxu0 %v136
    %221 = vmatpush.msra.mxu0 %v132
    %222 = vmatmul.f32.gmra.mxu0 %v124
    %v223 = vpop.f32.mrf.mxu0
    %v224 = vadd.f32 %v198, %v223
    %225 = vmatmul.f32.gmra.mxu0 %v125
    %v226 = vpop.f32.mrf.mxu0
    %v227 = vadd.f32 %v198, %v226
    %228 = vmatmul.f32.gmra.mxu0 %v126
    %v229 = vpop.f32.mrf.mxu0
    %v230 = vadd.f32 %v198, %v229
    %231 = vmatmul.f32.gmra.mxu0 %v127
    %v232 = vpop.f32.mrf.mxu0
    %v233 = vadd.f32 %v198, %v232
    %234 = vmatmul.f32.gmra.mxu0 %v128
    %v235 = vpop.f32.mrf.mxu0
    %v236 = vadd.f32 %v198, %v235
    %237 = vmatmul.f32.gmra.mxu0 %v129
    %v238 = vpop.f32.mrf.mxu0
    %v239 = vadd.f32 %v198, %v238
    %240 = vmatmul.f32.gmra.mxu0 %v130
    %v241 = vpop.f32.mrf.mxu0
    %v242 = vadd.f32 %v198, %v241
    %243 = vmatmul.f32.gmra.mxu0 %v131
    %v244 = vpop.f32.mrf.mxu0
    %v245 = vadd.f32 %v198, %v244
    %246 = vdwg.mxu0
    %247 = vmatpush.msra.mxu0 %v193
    %248 = vmatpush.msra.mxu0 %v189
    %249 = vmatpush.msra.mxu0 %v185
    %250 = vmatpush.msra.mxu0 %v181
    %251 = vmatpush.msra.mxu0 %v177
    %252 = vmatpush.msra.mxu0 %v173
    %253 = vmatpush.msra.mxu0 %v169
    %254 = vmatpush.msra.mxu0 %v165
    %255 = vmatpush.msra.mxu0 %v161
    %256 = vmatpush.msra.mxu0 %v157
    %257 = vmatpush.msra.mxu0 %v153
    %258 = vmatpush.msra.mxu0 %v149
    %259 = vmatpush.msra.mxu0 %v145
    %260 = vmatpush.msra.mxu0 %v141
    %261 = vmatpush.msra.mxu0 %v137
    %262 = vmatpush.msra.mxu0 %v133
    %263 = vmatmul.f32.gmra.mxu0 %v124
    %v264 = vpop.f32.mrf.mxu0
    %v265 = vadd.f32 %v199, %v264
    %266 = vmatmul.f32.gmra.mxu0 %v125
    %v267 = vpop.f32.mrf.mxu0
    %v268 = vadd.f32 %v199, %v267
    %269 = vmatmul.f32.gmra.mxu0 %v126
    %v270 = vpop.f32.mrf.mxu0
    %v271 = vadd.f32 %v199, %v270
    %272 = vmatmul.f32.gmra.mxu0 %v127
    %v273 = vpop.f32.mrf.mxu0
    %v274 = vadd.f32 %v199, %v273
    %275 = vmatmul.f32.gmra.mxu0 %v128
    %v276 = vpop.f32.mrf.mxu0
    %v277 = vadd.f32 %v199, %v276
    %278 = vmatmul.f32.gmra.mxu0 %v129
    %v279 = vpop.f32.mrf.mxu0
    %v280 = vadd.f32 %v199, %v279
    %281 = vmatmul.f32.gmra.mxu0 %v130
    %v282 = vpop.f32.mrf.mxu0
    %v283 = vadd.f32 %v199, %v282
    %284 = vmatmul.f32.gmra.mxu0 %v131
    %v285 = vpop.f32.mrf.mxu0
    %v286 = vadd.f32 %v199, %v285
    %287 = vdwg.mxu0
    %288 = vmatpush.msra.mxu0 %v194
    %289 = vmatpush.msra.mxu0 %v190
    %290 = vmatpush.msra.mxu0 %v186
    %291 = vmatpush.msra.mxu0 %v182
    %292 = vmatpush.msra.mxu0 %v178
    %293 = vmatpush.msra.mxu0 %v174
    %294 = vmatpush.msra.mxu0 %v170
    %295 = vmatpush.msra.mxu0 %v166
    %296 = vmatpush.msra.mxu0 %v162
    %297 = vmatpush.msra.mxu0 %v158
    %298 = vmatpush.msra.mxu0 %v154
    %299 = vmatpush.msra.mxu0 %v150
    %300 = vmatpush.msra.mxu0 %v146
    %301 = vmatpush.msra.mxu0 %v142
    %302 = vmatpush.msra.mxu0 %v138
    %303 = vmatpush.msra.mxu0 %v134
    %304 = vmatmul.f32.gmra.mxu0 %v124
    %v305 = vpop.f32.mrf.mxu0
    %v306 = vadd.f32 %v200, %v305
    %307 = vmatmul.f32.gmra.mxu0 %v125
    %v308 = vpop.f32.mrf.mxu0
    %v309 = vadd.f32 %v200, %v308
    %310 = vmatmul.f32.gmra.mxu0 %v126
    %v311 = vpop.f32.mrf.mxu0
    %v312 = vadd.f32 %v200, %v311
    %313 = vmatmul.f32.gmra.mxu0 %v127
    %v314 = vpop.f32.mrf.mxu0
    %v315 = vadd.f32 %v200, %v314
    %316 = vmatmul.f32.gmra.mxu0 %v128
    %v317 = vpop.f32.mrf.mxu0
    %v318 = vadd.f32 %v200, %v317
    %319 = vmatmul.f32.gmra.mxu0 %v129
    %v320 = vpop.f32.mrf.mxu0
    %v321 = vadd.f32 %v200, %v320
    %322 = vmatmul.f32.gmra.mxu0 %v130
    %v323 = vpop.f32.mrf.mxu0
    %v324 = vadd.f32 %v200, %v323
    %325 = vmatmul.f32.gmra.mxu0 %v131
    %v326 = vpop.f32.mrf.mxu0
    %v327 = vadd.f32 %v200, %v326
    %328 = vdwg.mxu0
    %329 = vmatpush.msra.mxu0 %v195
    %330 = vmatpush.msra.mxu0 %v191
    %331 = vmatpush.msra.mxu0 %v187
    %332 = vmatpush.msra.mxu0 %v183
    %333 = vmatpush.msra.mxu0 %v179
    %334 = vmatpush.msra.mxu0 %v175
    %335 = vmatpush.msra.mxu0 %v171
    %336 = vmatpush.msra.mxu0 %v167
    %337 = vmatpush.msra.mxu0 %v163
    %338 = vmatpush.msra.mxu0 %v159
    %339 = vmatpush.msra.mxu0 %v155
    %340 = vmatpush.msra.mxu0 %v151
    %341 = vmatpush.msra.mxu0 %v147
    %342 = vmatpush.msra.mxu0 %v143
    %343 = vmatpush.msra.mxu0 %v139
    %344 = vmatpush.msra.mxu0 %v135
    %345 = vmatmul.f32.gmra.mxu0 %v124
    %v346 = vpop.f32.mrf.mxu0
    %v347 = vadd.f32 %v201, %v346
    %348 = vmatmul.f32.gmra.mxu0 %v125
    %v349 = vpop.f32.mrf.mxu0
    %v350 = vadd.f32 %v201, %v349
    %351 = vmatmul.f32.gmra.mxu0 %v126
    %v352 = vpop.f32.mrf.mxu0
    %v353 = vadd.f32 %v201, %v352
    %354 = vmatmul.f32.gmra.mxu0 %v127
    %v355 = vpop.f32.mrf.mxu0
    %v356 = vadd.f32 %v201, %v355
    %357 = vmatmul.f32.gmra.mxu0 %v128
    %v358 = vpop.f32.mrf.mxu0
    %v359 = vadd.f32 %v201, %v358
    %360 = vmatmul.f32.gmra.mxu0 %v129
    %v361 = vpop.f32.mrf.mxu0
    %v362 = vadd.f32 %v201, %v361
    %363 = vmatmul.f32.gmra.mxu0 %v130
    %v364 = vpop.f32.mrf.mxu0
    %v365 = vadd.f32 %v201, %v364
    %366 = vmatmul.f32.gmra.mxu0 %v131
    %v367 = vpop.f32.mrf.mxu0
    %v368 = vadd.f32 %v201, %v367
    %369 = vdwg.mxu0
    %370 = vst [vmem:[#allocation2] sm:$0xff] %v224
    %371 = vst [vmem:[#allocation2 + $0x8] sm:$0xff] %v265
    %372 = vst [vmem:[#allocation2 + $0x10] sm:$0xff] %v306
    %373 = vst [vmem:[#allocation2 + $0x18] sm:$0xff] %v347
    %374 = vst [vmem:[#allocation2 + $0x20] sm:$0xff] %v227
    %375 = vst [vmem:[#allocation2 + $0x28] sm:$0xff] %v268
    %376 = vst [vmem:[#allocation2 + $0x30] sm:$0xff] %v309
    %377 = vst [vmem:[#allocation2 + $0x38] sm:$0xff] %v350
    %378 = vst [vmem:[#allocation2 + $0x40] sm:$0xff] %v230
    %379 = vst [vmem:[#allocation2 + $0x48] sm:$0xff] %v271
    %380 = vst [vmem:[#allocation2 + $0x50] sm:$0xff] %v312
    %381 = vst [vmem:[#allocation2 + $0x58] sm:$0xff] %v353
    %382 = vst [vmem:[#allocation2 + $0x60] sm:$0xff] %v233
    %383 = vst [vmem:[#allocation2 + $0x68] sm:$0xff] %v274
    %384 = vst [vmem:[#allocation2 + $0x70] sm:$0xff] %v315
    %385 = vst [vmem:[#allocation2 + $0x78] sm:$0xff] %v356
    %386 = vst [vmem:[#allocation2 + $0x80] sm:$0xff] %v236
    %387 = vst [vmem:[#allocation2 + $0x88] sm:$0xff] %v277
    %388 = vst [vmem:[#allocation2 + $0x90] sm:$0xff] %v318
    %389 = vst [vmem:[#allocation2 + $0x98] sm:$0xff] %v359
    %390 = vst [vmem:[#allocation2 + $0xa0] sm:$0xff] %v239
    %391 = vst [vmem:[#allocation2 + $0xa8] sm:$0xff] %v280
    %392 = vst [vmem:[#allocation2 + $0xb0] sm:$0xff] %v321
    %393 = vst [vmem:[#allocation2 + $0xb8] sm:$0xff] %v362
    %394 = vst [vmem:[#allocation2 + $0xc0] sm:$0xff] %v242
    %395 = vst [vmem:[#allocation2 + $0xc8] sm:$0xff] %v283
    %396 = vst [vmem:[#allocation2 + $0xd0] sm:$0xff] %v324
    %397 = vst [vmem:[#allocation2 + $0xd8] sm:$0xff] %v365
    %398 = vst [vmem:[#allocation2 + $0xe0] sm:$0xff] %v245
    %399 = vst [vmem:[#allocation2 + $0xe8] sm:$0xff] %v286
    %400 = vst [vmem:[#allocation2 + $0xf0] sm:$0xff] %v327
    %401 = vst [vmem:[#allocation2 + $0xf8] sm:$0xff] %v368
    %v402 = vld [vmem:[#allocation12] sm:$0xff]
    %v403 = vld [vmem:[#allocation12 + $0x8] sm:$0xff]
    %v404 = vld [vmem:[#allocation12 + $0x10] sm:$0xff]
    %v405 = vld [vmem:[#allocation12 + $0x18] sm:$0xff]
    %v406 = vld [vmem:[#allocation12 + $0x20] sm:$0xff]
    %v407 = vld [vmem:[#allocation12 + $0x28] sm:$0xff]
    %v408 = vld [vmem:[#allocation12 + $0x30] sm:$0xff]
    %v409 = vld [vmem:[#allocation12 + $0x38] sm:$0xff]
    %v410 = vld [vmem:[#allocation12 + $0x40] sm:$0xff]
    %v411 = vld [vmem:[#allocation12 + $0x48] sm:$0xff]
    %v412 = vld [vmem:[#allocation12 + $0x50] sm:$0xff]
    %v413 = vld [vmem:[#allocation12 + $0x58] sm:$0xff]
    %v414 = vld [vmem:[#allocation12 + $0x60] sm:$0xff]
    %v415 = vld [vmem:[#allocation12 + $0x68] sm:$0xff]
    %v416 = vld [vmem:[#allocation12 + $0x70] sm:$0xff]
    %v417 = vld [vmem:[#allocation12 + $0x78] sm:$0xff]
    %v418 = vld [vmem:[#allocation12 + $0x80] sm:$0xff]
    %v419 = vld [vmem:[#allocation12 + $0x88] sm:$0xff]
    %v420 = vld [vmem:[#allocation12 + $0x90] sm:$0xff]
    %v421 = vld [vmem:[#allocation12 + $0x98] sm:$0xff]
    %v422 = vld [vmem:[#allocation12 + $0xa0] sm:$0xff]
    %v423 = vld [vmem:[#allocation12 + $0xa8] sm:$0xff]
    %v424 = vld [vmem:[#allocation12 + $0xb0] sm:$0xff]
    %v425 = vld [vmem:[#allocation12 + $0xb8] sm:$0xff]
    %v426 = vld [vmem:[#allocation12 + $0xc0] sm:$0xff]
    %v427 = vld [vmem:[#allocation12 + $0xc8] sm:$0xff]
    %v428 = vld [vmem:[#allocation12 + $0xd0] sm:$0xff]
    %v429 = vld [vmem:[#allocation12 + $0xd8] sm:$0xff]
    %v430 = vld [vmem:[#allocation12 + $0xe0] sm:$0xff]
    %v431 = vld [vmem:[#allocation12 + $0xe8] sm:$0xff]
    %v432 = vld [vmem:[#allocation12 + $0xf0] sm:$0xff]
    %v433 = vld [vmem:[#allocation12 + $0xf8] sm:$0xff]
    %v434 = vld [vmem:[#allocation12 + $0x100] sm:$0xff]
    %v435 = vld [vmem:[#allocation12 + $0x108] sm:$0xff]
    %v436 = vld [vmem:[#allocation12 + $0x110] sm:$0xff]
    %v437 = vld [vmem:[#allocation12 + $0x118] sm:$0xff]
    %v438 = vld [vmem:[#allocation12 + $0x120] sm:$0xff]
    %v439 = vld [vmem:[#allocation12 + $0x128] sm:$0xff]
    %v440 = vld [vmem:[#allocation12 + $0x130] sm:$0xff]
    %v441 = vld [vmem:[#allocation12 + $0x138] sm:$0xff]
    %v442 = vld [vmem:[#allocation12 + $0x140] sm:$0xff]
    %v443 = vld [vmem:[#allocation12 + $0x148] sm:$0xff]
    %v444 = vld [vmem:[#allocation12 + $0x150] sm:$0xff]
    %v445 = vld [vmem:[#allocation12 + $0x158] sm:$0xff]
    %v446 = vld [vmem:[#allocation12 + $0x160] sm:$0xff]
    %v447 = vld [vmem:[#allocation12 + $0x168] sm:$0xff]
    %v448 = vld [vmem:[#allocation12 + $0x170] sm:$0xff]
    %v449 = vld [vmem:[#allocation12 + $0x178] sm:$0xff]
    %v450 = vld [vmem:[#allocation12 + $0x180] sm:$0xff]
    %v451 = vld [vmem:[#allocation12 + $0x188] sm:$0xff]
    %v452 = vld [vmem:[#allocation12 + $0x190] sm:$0xff]
    %v453 = vld [vmem:[#allocation12 + $0x198] sm:$0xff]
    %v454 = vld [vmem:[#allocation12 + $0x1a0] sm:$0xff]
    %v455 = vld [vmem:[#allocation12 + $0x1a8] sm:$0xff]
    %v456 = vld [vmem:[#allocation12 + $0x1b0] sm:$0xff]
    %v457 = vld [vmem:[#allocation12 + $0x1b8] sm:$0xff]
    %v458 = vld [vmem:[#allocation12 + $0x1c0] sm:$0xff]
    %v459 = vld [vmem:[#allocation12 + $0x1c8] sm:$0xff]
    %v460 = vld [vmem:[#allocation12 + $0x1d0] sm:$0xff]
    %v461 = vld [vmem:[#allocation12 + $0x1d8] sm:$0xff]
    %v462 = vld [vmem:[#allocation12 + $0x1e0] sm:$0xff]
    %v463 = vld [vmem:[#allocation12 + $0x1e8] sm:$0xff]
    %v464 = vld [vmem:[#allocation12 + $0x1f0] sm:$0xff]
    %v465 = vld [vmem:[#allocation12 + $0x1f8] sm:$0xff]
    %v466 = vld [vmem:[#allocation7] sm:$0xff]
    %v467 = vld [vmem:[#allocation9] sm:$0xff]
    %s468 = smul.u32 0, 4
    %s469 = smul.addr %s468, 8
    %s470 = scalar_lea.vmem [#allocation2], %s469
    %v471 = vld [vmem:[%s470] sm:$0xff]
    %v472 = vld [vmem:[%s470 + $0x8] sm:$0xff]
    %v473 = vld [vmem:[%s470 + $0x10] sm:$0xff]
    %v474 = vld [vmem:[%s470 + $0x18] sm:$0xff]
    %475 = vmatpush.msra.mxu0 %v462
    %476 = vmatpush.msra.mxu0 %v458
    %477 = vmatpush.msra.mxu0 %v454
    %478 = vmatpush.msra.mxu0 %v450
    %479 = vmatpush.msra.mxu0 %v446
    %480 = vmatpush.msra.mxu0 %v442
    %481 = vmatpush.msra.mxu0 %v438
    %482 = vmatpush.msra.mxu0 %v434
    %483 = vmatpush.msra.mxu0 %v430
    %484 = vmatpush.msra.mxu0 %v426
    %485 = vmatpush.msra.mxu0 %v422
    %486 = vmatpush.msra.mxu0 %v418
    %487 = vmatpush.msra.mxu0 %v414
    %488 = vmatpush.msra.mxu0 %v410
    %489 = vmatpush.msra.mxu0 %v406
    %490 = vmatpush.msra.mxu0 %v402
    %491 = vmatmul.f32.gmra.mxu0 %v466
    %v492 = vpop.f32.mrf.mxu0
    %v493 = vadd.f32 %v471, %v492
    %494 = vdwg.mxu0
    %495 = vmatpush.msra.mxu0 %v463
    %496 = vmatpush.msra.mxu0 %v459
    %497 = vmatpush.msra.mxu0 %v455
    %498 = vmatpush.msra.mxu0 %v451
    %499 = vmatpush.msra.mxu0 %v447
    %500 = vmatpush.msra.mxu0 %v443
    %501 = vmatpush.msra.mxu0 %v439
    %502 = vmatpush.msra.mxu0 %v435
    %503 = vmatpush.msra.mxu0 %v431
    %504 = vmatpush.msra.mxu0 %v427
    %505 = vmatpush.msra.mxu0 %v423
    %506 = vmatpush.msra.mxu0 %v419
    %507 = vmatpush.msra.mxu0 %v415
    %508 = vmatpush.msra.mxu0 %v411
    %509 = vmatpush.msra.mxu0 %v407
    %510 = vmatpush.msra.mxu0 %v403
    %511 = vmatmul.f32.gmra.mxu0 %v466
    %v512 = vpop.f32.mrf.mxu0
    %v513 = vadd.f32 %v472, %v512
    %514 = vdwg.mxu0
    %515 = vmatpush.msra.mxu0 %v464
    %516 = vmatpush.msra.mxu0 %v460
    %517 = vmatpush.msra.mxu0 %v456
    %518 = vmatpush.msra.mxu0 %v452
    %519 = vmatpush.msra.mxu0 %v448
    %520 = vmatpush.msra.mxu0 %v444
    %521 = vmatpush.msra.mxu0 %v440
    %522 = vmatpush.msra.mxu0 %v436
    %523 = vmatpush.msra.mxu0 %v432
    %524 = vmatpush.msra.mxu0 %v428
    %525 = vmatpush.msra.mxu0 %v424
    %526 = vmatpush.msra.mxu0 %v420
    %527 = vmatpush.msra.mxu0 %v416
    %528 = vmatpush.msra.mxu0 %v412
    %529 = vmatpush.msra.mxu0 %v408
    %530 = vmatpush.msra.mxu0 %v404
    %531 = vmatmul.f32.gmra.mxu0 %v466
    %v532 = vpop.f32.mrf.mxu0
    %v533 = vadd.f32 %v473, %v532
    %534 = vdwg.mxu0
    %535 = vmatpush.msra.mxu0 %v465
    %536 = vmatpush.msra.mxu0 %v461
    %537 = vmatpush.msra.mxu0 %v457
    %538 = vmatpush.msra.mxu0 %v453
    %539 = vmatpush.msra.mxu0 %v449
    %540 = vmatpush.msra.mxu0 %v445
    %541 = vmatpush.msra.mxu0 %v441
    %542 = vmatpush.msra.mxu0 %v437
    %543 = vmatpush.msra.mxu0 %v433
    %544 = vmatpush.msra.mxu0 %v429
    %545 = vmatpush.msra.mxu0 %v425
    %546 = vmatpush.msra.mxu0 %v421
    %547 = vmatpush.msra.mxu0 %v417
    %548 = vmatpush.msra.mxu0 %v413
    %549 = vmatpush.msra.mxu0 %v409
    %550 = vmatpush.msra.mxu0 %v405
    %551 = vmatmul.f32.gmra.mxu0 %v466
    %v552 = vpop.f32.mrf.mxu0
    %v553 = vadd.f32 %v474, %v552
    %554 = vdwg.mxu0
    %v555 = vxor.u32 %v493, 2147483648
    %v556 = vmul.f32 %v555, 1.442695
    %v557 = vpow.pop %v556
    %v558 = vadd.f32 %v557, 1.0
    %v559 = vrcp.pop %v558
    %v560 = vmul.f32 %v558, %v559
    %v561 = vsub.f32 1.0, %v560
    %v562 = vmul.f32 %v559, %v561
    %v563 = vadd.f32 %v559, %v562
    %vm564 = vweird.f32 %v558
    %vm565 = vweird.f32 %v559
    %vm566 = vmor %vm564, %vm565
    %v567 = vsel %vm566, %v559, %v563
    %v568 = vand.u32 2147483647, %v558
    %vm569 = vcmp.eq.f32.partialorder %v568, 8.507059e+37
    %v570 = vand.u32 %v558, 2147483648
    %v571 = vor.u32 1.1754944e-38, %v570
    %v572 = vsel %vm569, %v571, %v567
    %v573 = vmul.f32 1.0, %v572
    %v574 = vxor.u32 %v513, 2147483648
    %v575 = vmul.f32 %v574, 1.442695
    %v576 = vpow.pop %v575
    %v577 = vadd.f32 %v576, 1.0
    %v578 = vrcp.pop %v577
    %v579 = vmul.f32 %v577, %v578
    %v580 = vsub.f32 1.0, %v579
    %v581 = vmul.f32 %v578, %v580
    %v582 = vadd.f32 %v578, %v581
    %vm583 = vweird.f32 %v577
    %vm584 = vweird.f32 %v578
    %vm585 = vmor %vm583, %vm584
    %v586 = vsel %vm585, %v578, %v582
    %v587 = vand.u32 2147483647, %v577
    %vm588 = vcmp.eq.f32.partialorder %v587, 8.507059e+37
    %v589 = vand.u32 %v577, 2147483648
    %v590 = vor.u32 1.1754944e-38, %v589
    %v591 = vsel %vm588, %v590, %v586
    %v592 = vmul.f32 1.0, %v591
    %v593 = vtanh.pop %v533
    %v594 = vxor.u32 %v553, 2147483648
    %v595 = vmul.f32 %v594, 1.442695
    %v596 = vpow.pop %v595
    %v597 = vadd.f32 %v596, 1.0
    %v598 = vrcp.pop %v597
    %v599 = vmul.f32 %v597, %v598
    %v600 = vsub.f32 1.0, %v599
    %v601 = vmul.f32 %v598, %v600
    %v602 = vadd.f32 %v598, %v601
    %vm603 = vweird.f32 %v597
    %vm604 = vweird.f32 %v598
    %vm605 = vmor %vm603, %vm604
    %v606 = vsel %vm605, %v598, %v602
    %v607 = vand.u32 2147483647, %v597
    %vm608 = vcmp.eq.f32.partialorder %v607, 8.507059e+37
    %v609 = vand.u32 %v597, 2147483648
    %v610 = vor.u32 1.1754944e-38, %v609
    %v611 = vsel %vm608, %v610, %v606
    %v612 = vmul.f32 1.0, %v611
    %v613 = vmul.f32 %v592, %v467
    %v614 = vmul.f32 %v573, %v593
    %v615 = vadd.f32 %v613, %v614
    %v616 = vtanh.pop %v615
    %v617 = vmul.f32 %v612, %v616
    %618 = vst [vmem:[#allocation3] sm:$0xff] %v617
    %s619 = smul.u32 1, 4
    %s620 = smul.addr %s619, 8
    %s621 = scalar_lea.vmem [#allocation2], %s620
    %v622 = vld [vmem:[%s621] sm:$0xff]
    %v623 = vld [vmem:[%s621 + $0x8] sm:$0xff]
    %v624 = vld [vmem:[%s621 + $0x10] sm:$0xff]
    %v625 = vld [vmem:[%s621 + $0x18] sm:$0xff]
    %626 = vmatpush.msra.mxu0 %v462
    %627 = vmatpush.msra.mxu0 %v458
    %628 = vmatpush.msra.mxu0 %v454
    %629 = vmatpush.msra.mxu0 %v450
    %630 = vmatpush.msra.mxu0 %v446
    %631 = vmatpush.msra.mxu0 %v442
    %632 = vmatpush.msra.mxu0 %v438
    %633 = vmatpush.msra.mxu0 %v434
    %634 = vmatpush.msra.mxu0 %v430
    %635 = vmatpush.msra.mxu0 %v426
    %636 = vmatpush.msra.mxu0 %v422
    %637 = vmatpush.msra.mxu0 %v418
    %638 = vmatpush.msra.mxu0 %v414
    %639 = vmatpush.msra.mxu0 %v410
    %640 = vmatpush.msra.mxu0 %v406
    %641 = vmatpush.msra.mxu0 %v402
    %642 = vmatmul.f32.gmra.mxu0 %v617
    %v643 = vpop.f32.mrf.mxu0
    %v644 = vadd.f32 %v622, %v643
    %645 = vdwg.mxu0
    %646 = vmatpush.msra.mxu0 %v463
    %647 = vmatpush.msra.mxu0 %v459
    %648 = vmatpush.msra.mxu0 %v455
    %649 = vmatpush.msra.mxu0 %v451
    %650 = vmatpush.msra.mxu0 %v447
    %651 = vmatpush.msra.mxu0 %v443
    %652 = vmatpush.msra.mxu0 %v439
    %653 = vmatpush.msra.mxu0 %v435
    %654 = vmatpush.msra.mxu0 %v431
    %655 = vmatpush.msra.mxu0 %v427
    %656 = vmatpush.msra.mxu0 %v423
    %657 = vmatpush.msra.mxu0 %v419
    %658 = vmatpush.msra.mxu0 %v415
    %659 = vmatpush.msra.mxu0 %v411
    %660 = vmatpush.msra.mxu0 %v407
    %661 = vmatpush.msra.mxu0 %v403
    %662 = vmatmul.f32.gmra.mxu0 %v617
    %v663 = vpop.f32.mrf.mxu0
    %v664 = vadd.f32 %v623, %v663
    %665 = vdwg.mxu0
    %666 = vmatpush.msra.mxu0 %v464
    %667 = vmatpush.msra.mxu0 %v460
    %668 = vmatpush.msra.mxu0 %v456
    %669 = vmatpush.msra.mxu0 %v452
    %670 = vmatpush.msra.mxu0 %v448
    %671 = vmatpush.msra.mxu0 %v444
    %672 = vmatpush.msra.mxu0 %v440
    %673 = vmatpush.msra.mxu0 %v436
    %674 = vmatpush.msra.mxu0 %v432
    %675 = vmatpush.msra.mxu0 %v428
    %676 = vmatpush.msra.mxu0 %v424
    %677 = vmatpush.msra.mxu0 %v420
    %678 = vmatpush.msra.mxu0 %v416
    %679 = vmatpush.msra.mxu0 %v412
    %680 = vmatpush.msra.mxu0 %v408
    %681 = vmatpush.msra.mxu0 %v404
    %682 = vmatmul.f32.gmra.mxu0 %v617
    %v683 = vpop.f32.mrf.mxu0
    %v684 = vadd.f32 %v624, %v683
    %685 = vdwg.mxu0
    %686 = vmatpush.msra.mxu0 %v465
    %687 = vmatpush.msra.mxu0 %v461
    %688 = vmatpush.msra.mxu0 %v457
    %689 = vmatpush.msra.mxu0 %v453
    %690 = vmatpush.msra.mxu0 %v449
    %691 = vmatpush.msra.mxu0 %v445
    %692 = vmatpush.msra.mxu0 %v441
    %693 = vmatpush.msra.mxu0 %v437
    %694 = vmatpush.msra.mxu0 %v433
    %695 = vmatpush.msra.mxu0 %v429
    %696 = vmatpush.msra.mxu0 %v425
    %697 = vmatpush.msra.mxu0 %v421
    %698 = vmatpush.msra.mxu0 %v417
    %699 = vmatpush.msra.mxu0 %v413
    %700 = vmatpush.msra.mxu0 %v409
    %701 = vmatpush.msra.mxu0 %v405
    %702 = vmatmul.f32.gmra.mxu0 %v617
    %v703 = vpop.f32.mrf.mxu0
    %v704 = vadd.f32 %v625, %v703
    %705 = vdwg.mxu0
    %v706 = vxor.u32 %v644, 2147483648
    %v707 = vmul.f32 %v706, 1.442695
    %v708 = vpow.pop %v707
    %v709 = vadd.f32 %v708, 1.0
    %v710 = vrcp.pop %v709
    %v711 = vmul.f32 %v709, %v710
    %v712 = vsub.f32 1.0, %v711
    %v713 = vmul.f32 %v710, %v712
    %v714 = vadd.f32 %v710, %v713
    %vm715 = vweird.f32 %v709
    %vm716 = vweird.f32 %v710
    %vm717 = vmor %vm715, %vm716
    %v718 = vsel %vm717, %v710, %v714
    %v719 = vand.u32 2147483647, %v709
    %vm720 = vcmp.eq.f32.partialorder %v719, 8.507059e+37
    %v721 = vand.u32 %v709, 2147483648
    %v722 = vor.u32 1.1754944e-38, %v721
    %v723 = vsel %vm720, %v722, %v718
    %v724 = vmul.f32 1.0, %v723
    %v725 = vxor.u32 %v664, 2147483648
    %v726 = vmul.f32 %v725, 1.442695
    %v727 = vpow.pop %v726
    %v728 = vadd.f32 %v727, 1.0
    %v729 = vrcp.pop %v728
    %v730 = vmul.f32 %v728, %v729
    %v731 = vsub.f32 1.0, %v730
    %v732 = vmul.f32 %v729, %v731
    %v733 = vadd.f32 %v729, %v732
    %vm734 = vweird.f32 %v728
    %vm735 = vweird.f32 %v729
    %vm736 = vmor %vm734, %vm735
    %v737 = vsel %vm736, %v729, %v733
    %v738 = vand.u32 2147483647, %v728
    %vm739 = vcmp.eq.f32.partialorder %v738, 8.507059e+37
    %v740 = vand.u32 %v728, 2147483648
    %v741 = vor.u32 1.1754944e-38, %v740
    %v742 = vsel %vm739, %v741, %v737
    %v743 = vmul.f32 1.0, %v742
    %v744 = vtanh.pop %v684
    %v745 = vxor.u32 %v704, 2147483648
    %v746 = vmul.f32 %v745, 1.442695
    %v747 = vpow.pop %v746
    %v748 = vadd.f32 %v747, 1.0
    %v749 = vrcp.pop %v748
    %v750 = vmul.f32 %v748, %v749
    %v751 = vsub.f32 1.0, %v750
    %v752 = vmul.f32 %v749, %v751
    %v753 = vadd.f32 %v749, %v752
    %vm754 = vweird.f32 %v748
    %vm755 = vweird.f32 %v749
    %vm756 = vmor %vm754, %vm755
    %v757 = vsel %vm756, %v749, %v753
    %v758 = vand.u32 2147483647, %v748
    %vm759 = vcmp.eq.f32.partialorder %v758, 8.507059e+37
    %v760 = vand.u32 %v748, 2147483648
    %v761 = vor.u32 1.1754944e-38, %v760
    %v762 = vsel %vm759, %v761, %v757
    %v763 = vmul.f32 1.0, %v762
    %v764 = vmul.f32 %v743, %v615
    %v765 = vmul.f32 %v724, %v744
    %v766 = vadd.f32 %v764, %v765
    %v767 = vtanh.pop %v766
    %v768 = vmul.f32 %v763, %v767
    %s769 = scalar_lea.vmem [#allocation3], 8
    %770 = vst [vmem:[%s769] sm:$0xff] %v768
    %s771 = smul.u32 2, 4
    %s772 = smul.addr %s771, 8
    %s773 = scalar_lea.vmem [#allocation2], %s772
    %v774 = vld [vmem:[%s773] sm:$0xff]
    %v775 = vld [vmem:[%s773 + $0x8] sm:$0xff]
    %v776 = vld [vmem:[%s773 + $0x10] sm:$0xff]
    %v777 = vld [vmem:[%s773 + $0x18] sm:$0xff]
    %778 = vmatpush.msra.mxu0 %v462
    %779 = vmatpush.msra.mxu0 %v458
    %780 = vmatpush.msra.mxu0 %v454
    %781 = vmatpush.msra.mxu0 %v450
    %782 = vmatpush.msra.mxu0 %v446
    %783 = vmatpush.msra.mxu0 %v442
    %784 = vmatpush.msra.mxu0 %v438
    %785 = vmatpush.msra.mxu0 %v434
    %786 = vmatpush.msra.mxu0 %v430
    %787 = vmatpush.msra.mxu0 %v426
    %788 = vmatpush.msra.mxu0 %v422
    %789 = vmatpush.msra.mxu0 %v418
    %790 = vmatpush.msra.mxu0 %v414
    %791 = vmatpush.msra.mxu0 %v410
    %792 = vmatpush.msra.mxu0 %v406
    %793 = vmatpush.msra.mxu0 %v402
    %794 = vmatmul.f32.gmra.mxu0 %v768
    %v795 = vpop.f32.mrf.mxu0
    %v796 = vadd.f32 %v774, %v795
    %797 = vdwg.mxu0
    %798 = vmatpush.msra.mxu0 %v463
    %799 = vmatpush.msra.mxu0 %v459
    %800 = vmatpush.msra.mxu0 %v455
    %801 = vmatpush.msra.mxu0 %v451
    %802 = vmatpush.msra.mxu0 %v447
    %803 = vmatpush.msra.mxu0 %v443
    %804 = vmatpush.msra.mxu0 %v439
    %805 = vmatpush.msra.mxu0 %v435
    %806 = vmatpush.msra.mxu0 %v431
    %807 = vmatpush.msra.mxu0 %v427
    %808 = vmatpush.msra.mxu0 %v423
    %809 = vmatpush.msra.mxu0 %v419
    %810 = vmatpush.msra.mxu0 %v415
    %811 = vmatpush.msra.mxu0 %v411
    %812 = vmatpush.msra.mxu0 %v407
    %813 = vmatpush.msra.mxu0 %v403
    %814 = vmatmul.f32.gmra.mxu0 %v768
    %v815 = vpop.f32.mrf.mxu0
    %v816 = vadd.f32 %v775, %v815
    %817 = vdwg.mxu0
    %818 = vmatpush.msra.mxu0 %v464
    %819 = vmatpush.msra.mxu0 %v460
    %820 = vmatpush.msra.mxu0 %v456
    %821 = vmatpush.msra.mxu0 %v452
    %822 = vmatpush.msra.mxu0 %v448
    %823 = vmatpush.msra.mxu0 %v444
    %824 = vmatpush.msra.mxu0 %v440
    %825 = vmatpush.msra.mxu0 %v436
    %826 = vmatpush.msra.mxu0 %v432
    %827 = vmatpush.msra.mxu0 %v428
    %828 = vmatpush.msra.mxu0 %v424
    %829 = vmatpush.msra.mxu0 %v420
    %830 = vmatpush.msra.mxu0 %v416
    %831 = vmatpush.msra.mxu0 %v412
    %832 = vmatpush.msra.mxu0 %v408
    %833 = vmatpush.msra.mxu0 %v404
    %834 = vmatmul.f32.gmra.mxu0 %v768
    %v835 = vpop.f32.mrf.mxu0
    %v836 = vadd.f32 %v776, %v835
    %837 = vdwg.mxu0
    %838 = vmatpush.msra.mxu0 %v465
    %839 = vmatpush.msra.mxu0 %v461
    %840 = vmatpush.msra.mxu0 %v457
    %841 = vmatpush.msra.mxu0 %v453
    %842 = vmatpush.msra.mxu0 %v449
    %843 = vmatpush.msra.mxu0 %v445
    %844 = vmatpush.msra.mxu0 %v441
    %845 = vmatpush.msra.mxu0 %v437
    %846 = vmatpush.msra.mxu0 %v433
    %847 = vmatpush.msra.mxu0 %v429
    %848 = vmatpush.msra.mxu0 %v425
    %849 = vmatpush.msra.mxu0 %v421
    %850 = vmatpush.msra.mxu0 %v417
    %851 = vmatpush.msra.mxu0 %v413
    %852 = vmatpush.msra.mxu0 %v409
    %853 = vmatpush.msra.mxu0 %v405
    %854 = vmatmul.f32.gmra.mxu0 %v768
    %v855 = vpop.f32.mrf.mxu0
    %v856 = vadd.f32 %v777, %v855
    %857 = vdwg.mxu0
    %v858 = vxor.u32 %v796, 2147483648
    %v859 = vmul.f32 %v858, 1.442695
    %v860 = vpow.pop %v859
    %v861 = vadd.f32 %v860, 1.0
    %v862 = vrcp.pop %v861
    %v863 = vmul.f32 %v861, %v862
    %v864 = vsub.f32 1.0, %v863
    %v865 = vmul.f32 %v862, %v864
    %v866 = vadd.f32 %v862, %v865
    %vm867 = vweird.f32 %v861
    %vm868 = vweird.f32 %v862
    %vm869 = vmor %vm867, %vm868
    %v870 = vsel %vm869, %v862, %v866
    %v871 = vand.u32 2147483647, %v861
    %vm872 = vcmp.eq.f32.partialorder %v871, 8.507059e+37
    %v873 = vand.u32 %v861, 2147483648
    %v874 = vor.u32 1.1754944e-38, %v873
    %v875 = vsel %vm872, %v874, %v870
    %v876 = vmul.f32 1.0, %v875
    %v877 = vxor.u32 %v816, 2147483648
    %v878 = vmul.f32 %v877, 1.442695
    %v879 = vpow.pop %v878
    %v880 = vadd.f32 %v879, 1.0
    %v881 = vrcp.pop %v880
    %v882 = vmul.f32 %v880, %v881
    %v883 = vsub.f32 1.0, %v882
    %v884 = vmul.f32 %v881, %v883
    %v885 = vadd.f32 %v881, %v884
    %vm886 = vweird.f32 %v880
    %vm887 = vweird.f32 %v881
    %vm888 = vmor %vm886, %vm887
    %v889 = vsel %vm888, %v881, %v885
    %v890 = vand.u32 2147483647, %v880
    %vm891 = vcmp.eq.f32.partialorder %v890, 8.507059e+37
    %v892 = vand.u32 %v880, 2147483648
    %v893 = vor.u32 1.1754944e-38, %v892
    %v894 = vsel %vm891, %v893, %v889
    %v895 = vmul.f32 1.0, %v894
    %v896 = vtanh.pop %v836
    %v897 = vxor.u32 %v856, 2147483648
    %v898 = vmul.f32 %v897, 1.442695
    %v899 = vpow.pop %v898
    %v900 = vadd.f32 %v899, 1.0
    %v901 = vrcp.pop %v900
    %v902 = vmul.f32 %v900, %v901
    %v903 = vsub.f32 1.0, %v902
    %v904 = vmul.f32 %v901, %v903
    %v905 = vadd.f32 %v901, %v904
    %vm906 = vweird.f32 %v900
    %vm907 = vweird.f32 %v901
    %vm908 = vmor %vm906, %vm907
    %v909 = vsel %vm908, %v901, %v905
    %v910 = vand.u32 2147483647, %v900
    %vm911 = vcmp.eq.f32.partialorder %v910, 8.507059e+37
    %v912 = vand.u32 %v900, 2147483648
    %v913 = vor.u32 1.1754944e-38, %v912
    %v914 = vsel %vm911, %v913, %v909
    %v915 = vmul.f32 1.0, %v914
    %v916 = vmul.f32 %v895, %v766
    %v917 = vmul.f32 %v876, %v896
    %v918 = vadd.f32 %v916, %v917
    %v919 = vtanh.pop %v918
    %v920 = vmul.f32 %v915, %v919
    %s921 = scalar_lea.vmem [#allocation3], 16
    %922 = vst [vmem:[%s921] sm:$0xff] %v920
    %s923 = smul.u32 3, 4
    %s924 = smul.addr %s923, 8
    %s925 = scalar_lea.vmem [#allocation2], %s924
    %v926 = vld [vmem:[%s925] sm:$0xff]
    %v927 = vld [vmem:[%s925 + $0x8] sm:$0xff]
    %v928 = vld [vmem:[%s925 + $0x10] sm:$0xff]
    %v929 = vld [vmem:[%s925 + $0x18] sm:$0xff]
    %930 = vmatpush.msra.mxu0 %v462
    %931 = vmatpush.msra.mxu0 %v458
    %932 = vmatpush.msra.mxu0 %v454
    %933 = vmatpush.msra.mxu0 %v450
    %934 = vmatpush.msra.mxu0 %v446
    %935 = vmatpush.msra.mxu0 %v442
    %936 = vmatpush.msra.mxu0 %v438
    %937 = vmatpush.msra.mxu0 %v434
    %938 = vmatpush.msra.mxu0 %v430
    %939 = vmatpush.msra.mxu0 %v426
    %940 = vmatpush.msra.mxu0 %v422
    %941 = vmatpush.msra.mxu0 %v418
    %942 = vmatpush.msra.mxu0 %v414
    %943 = vmatpush.msra.mxu0 %v410
    %944 = vmatpush.msra.mxu0 %v406
    %945 = vmatpush.msra.mxu0 %v402
    %946 = vmatmul.f32.gmra.mxu0 %v920
    %v947 = vpop.f32.mrf.mxu0
    %v948 = vadd.f32 %v926, %v947
    %949 = vdwg.mxu0
    %950 = vmatpush.msra.mxu0 %v463
    %951 = vmatpush.msra.mxu0 %v459
    %952 = vmatpush.msra.mxu0 %v455
    %953 = vmatpush.msra.mxu0 %v451
    %954 = vmatpush.msra.mxu0 %v447
    %955 = vmatpush.msra.mxu0 %v443
    %956 = vmatpush.msra.mxu0 %v439
    %957 = vmatpush.msra.mxu0 %v435
    %958 = vmatpush.msra.mxu0 %v431
    %959 = vmatpush.msra.mxu0 %v427
    %960 = vmatpush.msra.mxu0 %v423
    %961 = vmatpush.msra.mxu0 %v419
    %962 = vmatpush.msra.mxu0 %v415
    %963 = vmatpush.msra.mxu0 %v411
    %964 = vmatpush.msra.mxu0 %v407
    %965 = vmatpush.msra.mxu0 %v403
    %966 = vmatmul.f32.gmra.mxu0 %v920
    %v967 = vpop.f32.mrf.mxu0
    %v968 = vadd.f32 %v927, %v967
    %969 = vdwg.mxu0
    %970 = vmatpush.msra.mxu0 %v464
    %971 = vmatpush.msra.mxu0 %v460
    %972 = vmatpush.msra.mxu0 %v456
    %973 = vmatpush.msra.mxu0 %v452
    %974 = vmatpush.msra.mxu0 %v448
    %975 = vmatpush.msra.mxu0 %v444
    %976 = vmatpush.msra.mxu0 %v440
    %977 = vmatpush.msra.mxu0 %v436
    %978 = vmatpush.msra.mxu0 %v432
    %979 = vmatpush.msra.mxu0 %v428
    %980 = vmatpush.msra.mxu0 %v424
    %981 = vmatpush.msra.mxu0 %v420
    %982 = vmatpush.msra.mxu0 %v416
    %983 = vmatpush.msra.mxu0 %v412
    %984 = vmatpush.msra.mxu0 %v408
    %985 = vmatpush.msra.mxu0 %v404
    %986 = vmatmul.f32.gmra.mxu0 %v920
    %v987 = vpop.f32.mrf.mxu0
    %v988 = vadd.f32 %v928, %v987
    %989 = vdwg.mxu0
    %990 = vmatpush.msra.mxu0 %v465
    %991 = vmatpush.msra.mxu0 %v461
    %992 = vmatpush.msra.mxu0 %v457
    %993 = vmatpush.msra.mxu0 %v453
    %994 = vmatpush.msra.mxu0 %v449
    %995 = vmatpush.msra.mxu0 %v445
    %996 = vmatpush.msra.mxu0 %v441
    %997 = vmatpush.msra.mxu0 %v437
    %998 = vmatpush.msra.mxu0 %v433
    %999 = vmatpush.msra.mxu0 %v429
    %1000 = vmatpush.msra.mxu0 %v425
    %1001 = vmatpush.msra.mxu0 %v421
    %1002 = vmatpush.msra.mxu0 %v417
    %1003 = vmatpush.msra.mxu0 %v413
    %1004 = vmatpush.msra.mxu0 %v409
    %1005 = vmatpush.msra.mxu0 %v405
    %1006 = vmatmul.f32.gmra.mxu0 %v920
    %v1007 = vpop.f32.mrf.mxu0
    %v1008 = vadd.f32 %v929, %v1007
    %1009 = vdwg.mxu0
    %v1010 = vxor.u32 %v948, 2147483648
    %v1011 = vmul.f32 %v1010, 1.442695
    %v1012 = vpow.pop %v1011
    %v1013 = vadd.f32 %v1012, 1.0
    %v1014 = vrcp.pop %v1013
    %v1015 = vmul.f32 %v1013, %v1014
    %v1016 = vsub.f32 1.0, %v1015
    %v1017 = vmul.f32 %v1014, %v1016
    %v1018 = vadd.f32 %v1014, %v1017
    %vm1019 = vweird.f32 %v1013
    %vm1020 = vweird.f32 %v1014
    %vm1021 = vmor %vm1019, %vm1020
    %v1022 = vsel %vm1021, %v1014, %v1018
    %v1023 = vand.u32 2147483647, %v1013
    %vm1024 = vcmp.eq.f32.partialorder %v1023, 8.507059e+37
    %v1025 = vand.u32 %v1013, 2147483648
    %v1026 = vor.u32 1.1754944e-38, %v1025
    %v1027 = vsel %vm1024, %v1026, %v1022
    %v1028 = vmul.f32 1.0, %v1027
    %v1029 = vxor.u32 %v968, 2147483648
    %v1030 = vmul.f32 %v1029, 1.442695
    %v1031 = vpow.pop %v1030
    %v1032 = vadd.f32 %v1031, 1.0
    %v1033 = vrcp.pop %v1032
    %v1034 = vmul.f32 %v1032, %v1033
    %v1035 = vsub.f32 1.0, %v1034
    %v1036 = vmul.f32 %v1033, %v1035
    %v1037 = vadd.f32 %v1033, %v1036
    %vm1038 = vweird.f32 %v1032
    %vm1039 = vweird.f32 %v1033
    %vm1040 = vmor %vm1038, %vm1039
    %v1041 = vsel %vm1040, %v1033, %v1037
    %v1042 = vand.u32 2147483647, %v1032
    %vm1043 = vcmp.eq.f32.partialorder %v1042, 8.507059e+37
    %v1044 = vand.u32 %v1032, 2147483648
    %v1045 = vor.u32 1.1754944e-38, %v1044
    %v1046 = vsel %vm1043, %v1045, %v1041
    %v1047 = vmul.f32 1.0, %v1046
    %v1048 = vtanh.pop %v988
    %v1049 = vxor.u32 %v1008, 2147483648
    %v1050 = vmul.f32 %v1049, 1.442695
    %v1051 = vpow.pop %v1050
    %v1052 = vadd.f32 %v1051, 1.0
    %v1053 = vrcp.pop %v1052
    %v1054 = vmul.f32 %v1052, %v1053
    %v1055 = vsub.f32 1.0, %v1054
    %v1056 = vmul.f32 %v1053, %v1055
    %v1057 = vadd.f32 %v1053, %v1056
    %vm1058 = vweird.f32 %v1052
    %vm1059 = vweird.f32 %v1053
    %vm1060 = vmor %vm1058, %vm1059
    %v1061 = vsel %vm1060, %v1053, %v1057
    %v1062 = vand.u32 2147483647, %v1052
    %vm1063 = vcmp.eq.f32.partialorder %v1062, 8.507059e+37
    %v1064 = vand.u32 %v1052, 2147483648
    %v1065 = vor.u32 1.1754944e-38, %v1064
    %v1066 = vsel %vm1063, %v1065, %v1061
    %v1067 = vmul.f32 1.0, %v1066
    %v1068 = vmul.f32 %v1047, %v918
    %v1069 = vmul.f32 %v1028, %v1048
    %v1070 = vadd.f32 %v1068, %v1069
    %v1071 = vtanh.pop %v1070
    %v1072 = vmul.f32 %v1067, %v1071
    %s1073 = scalar_lea.vmem [#allocation3], 24
    %1074 = vst [vmem:[%s1073] sm:$0xff] %v1072
    %s1075 = smul.u32 4, 4
    %s1076 = smul.addr %s1075, 8
    %s1077 = scalar_lea.vmem [#allocation2], %s1076
    %v1078 = vld [vmem:[%s1077] sm:$0xff]
    %v1079 = vld [vmem:[%s1077 + $0x8] sm:$0xff]
    %v1080 = vld [vmem:[%s1077 + $0x10] sm:$0xff]
    %v1081 = vld [vmem:[%s1077 + $0x18] sm:$0xff]
    %1082 = vmatpush.msra.mxu0 %v462
    %1083 = vmatpush.msra.mxu0 %v458
    %1084 = vmatpush.msra.mxu0 %v454
    %1085 = vmatpush.msra.mxu0 %v450
    %1086 = vmatpush.msra.mxu0 %v446
    %1087 = vmatpush.msra.mxu0 %v442
    %1088 = vmatpush.msra.mxu0 %v438
    %1089 = vmatpush.msra.mxu0 %v434
    %1090 = vmatpush.msra.mxu0 %v430
    %1091 = vmatpush.msra.mxu0 %v426
    %1092 = vmatpush.msra.mxu0 %v422
    %1093 = vmatpush.msra.mxu0 %v418
    %1094 = vmatpush.msra.mxu0 %v414
    %1095 = vmatpush.msra.mxu0 %v410
    %1096 = vmatpush.msra.mxu0 %v406
    %1097 = vmatpush.msra.mxu0 %v402
    %1098 = vmatmul.f32.gmra.mxu0 %v1072
    %v1099 = vpop.f32.mrf.mxu0
    %v1100 = vadd.f32 %v1078, %v1099
    %1101 = vdwg.mxu0
    %1102 = vmatpush.msra.mxu0 %v463
    %1103 = vmatpush.msra.mxu0 %v459
    %1104 = vmatpush.msra.mxu0 %v455
    %1105 = vmatpush.msra.mxu0 %v451
    %1106 = vmatpush.msra.mxu0 %v447
    %1107 = vmatpush.msra.mxu0 %v443
    %1108 = vmatpush.msra.mxu0 %v439
    %1109 = vmatpush.msra.mxu0 %v435
    %1110 = vmatpush.msra.mxu0 %v431
    %1111 = vmatpush.msra.mxu0 %v427
    %1112 = vmatpush.msra.mxu0 %v423
    %1113 = vmatpush.msra.mxu0 %v419
    %1114 = vmatpush.msra.mxu0 %v415
    %1115 = vmatpush.msra.mxu0 %v411
    %1116 = vmatpush.msra.mxu0 %v407
    %1117 = vmatpush.msra.mxu0 %v403
    %1118 = vmatmul.f32.gmra.mxu0 %v1072
    %v1119 = vpop.f32.mrf.mxu0
    %v1120 = vadd.f32 %v1079, %v1119
    %1121 = vdwg.mxu0
    %1122 = vmatpush.msra.mxu0 %v464
    %1123 = vmatpush.msra.mxu0 %v460
    %1124 = vmatpush.msra.mxu0 %v456
    %1125 = vmatpush.msra.mxu0 %v452
    %1126 = vmatpush.msra.mxu0 %v448
    %1127 = vmatpush.msra.mxu0 %v444
    %1128 = vmatpush.msra.mxu0 %v440
    %1129 = vmatpush.msra.mxu0 %v436
    %1130 = vmatpush.msra.mxu0 %v432
    %1131 = vmatpush.msra.mxu0 %v428
    %1132 = vmatpush.msra.mxu0 %v424
    %1133 = vmatpush.msra.mxu0 %v420
    %1134 = vmatpush.msra.mxu0 %v416
    %1135 = vmatpush.msra.mxu0 %v412
    %1136 = vmatpush.msra.mxu0 %v408
    %1137 = vmatpush.msra.mxu0 %v404
    %1138 = vmatmul.f32.gmra.mxu0 %v1072
    %v1139 = vpop.f32.mrf.mxu0
    %v1140 = vadd.f32 %v1080, %v1139
    %1141 = vdwg.mxu0
    %1142 = vmatpush.msra.mxu0 %v465
    %1143 = vmatpush.msra.mxu0 %v461
    %1144 = vmatpush.msra.mxu0 %v457
    %1145 = vmatpush.msra.mxu0 %v453
    %1146 = vmatpush.msra.mxu0 %v449
    %1147 = vmatpush.msra.mxu0 %v445
    %1148 = vmatpush.msra.mxu0 %v441
    %1149 = vmatpush.msra.mxu0 %v437
    %1150 = vmatpush.msra.mxu0 %v433
    %1151 = vmatpush.msra.mxu0 %v429
    %1152 = vmatpush.msra.mxu0 %v425
    %1153 = vmatpush.msra.mxu0 %v421
    %1154 = vmatpush.msra.mxu0 %v417
    %1155 = vmatpush.msra.mxu0 %v413
    %1156 = vmatpush.msra.mxu0 %v409
    %1157 = vmatpush.msra.mxu0 %v405
    %1158 = vmatmul.f32.gmra.mxu0 %v1072
    %v1159 = vpop.f32.mrf.mxu0
    %v1160 = vadd.f32 %v1081, %v1159
    %1161 = vdwg.mxu0
    %v1162 = vxor.u32 %v1100, 2147483648
    %v1163 = vmul.f32 %v1162, 1.442695
    %v1164 = vpow.pop %v1163
    %v1165 = vadd.f32 %v1164, 1.0
    %v1166 = vrcp.pop %v1165
    %v1167 = vmul.f32 %v1165, %v1166
    %v1168 = vsub.f32 1.0, %v1167
    %v1169 = vmul.f32 %v1166, %v1168
    %v1170 = vadd.f32 %v1166, %v1169
    %vm1171 = vweird.f32 %v1165
    %vm1172 = vweird.f32 %v1166
    %vm1173 = vmor %vm1171, %vm1172
    %v1174 = vsel %vm1173, %v1166, %v1170
    %v1175 = vand.u32 2147483647, %v1165
    %vm1176 = vcmp.eq.f32.partialorder %v1175, 8.507059e+37
    %v1177 = vand.u32 %v1165, 2147483648
    %v1178 = vor.u32 1.1754944e-38, %v1177
    %v1179 = vsel %vm1176, %v1178, %v1174
    %v1180 = vmul.f32 1.0, %v1179
    %v1181 = vxor.u32 %v1120, 2147483648
    %v1182 = vmul.f32 %v1181, 1.442695
    %v1183 = vpow.pop %v1182
    %v1184 = vadd.f32 %v1183, 1.0
    %v1185 = vrcp.pop %v1184
    %v1186 = vmul.f32 %v1184, %v1185
    %v1187 = vsub.f32 1.0, %v1186
    %v1188 = vmul.f32 %v1185, %v1187
    %v1189 = vadd.f32 %v1185, %v1188
    %vm1190 = vweird.f32 %v1184
    %vm1191 = vweird.f32 %v1185
    %vm1192 = vmor %vm1190, %vm1191
    %v1193 = vsel %vm1192, %v1185, %v1189
    %v1194 = vand.u32 2147483647, %v1184
    %vm1195 = vcmp.eq.f32.partialorder %v1194, 8.507059e+37
    %v1196 = vand.u32 %v1184, 2147483648
    %v1197 = vor.u32 1.1754944e-38, %v1196
    %v1198 = vsel %vm1195, %v1197, %v1193
    %v1199 = vmul.f32 1.0, %v1198
    %v1200 = vtanh.pop %v1140
    %v1201 = vxor.u32 %v1160, 2147483648
    %v1202 = vmul.f32 %v1201, 1.442695
    %v1203 = vpow.pop %v1202
    %v1204 = vadd.f32 %v1203, 1.0
    %v1205 = vrcp.pop %v1204
    %v1206 = vmul.f32 %v1204, %v1205
    %v1207 = vsub.f32 1.0, %v1206
    %v1208 = vmul.f32 %v1205, %v1207
    %v1209 = vadd.f32 %v1205, %v1208
    %vm1210 = vweird.f32 %v1204
    %vm1211 = vweird.f32 %v1205
    %vm1212 = vmor %vm1210, %vm1211
    %v1213 = vsel %vm1212, %v1205, %v1209
    %v1214 = vand.u32 2147483647, %v1204
    %vm1215 = vcmp.eq.f32.partialorder %v1214, 8.507059e+37
    %v1216 = vand.u32 %v1204, 2147483648
    %v1217 = vor.u32 1.1754944e-38, %v1216
    %v1218 = vsel %vm1215, %v1217, %v1213
    %v1219 = vmul.f32 1.0, %v1218
    %v1220 = vmul.f32 %v1199, %v1070
    %v1221 = vmul.f32 %v1180, %v1200
    %v1222 = vadd.f32 %v1220, %v1221
    %v1223 = vtanh.pop %v1222
    %v1224 = vmul.f32 %v1219, %v1223
    %s1225 = scalar_lea.vmem [#allocation3], 32
    %1226 = vst [vmem:[%s1225] sm:$0xff] %v1224
    %s1227 = smul.u32 5, 4
    %s1228 = smul.addr %s1227, 8
    %s1229 = scalar_lea.vmem [#allocation2], %s1228
    %v1230 = vld [vmem:[%s1229] sm:$0xff]
    %v1231 = vld [vmem:[%s1229 + $0x8] sm:$0xff]
    %v1232 = vld [vmem:[%s1229 + $0x10] sm:$0xff]
    %v1233 = vld [vmem:[%s1229 + $0x18] sm:$0xff]
    %1234 = vmatpush.msra.mxu0 %v462
    %1235 = vmatpush.msra.mxu0 %v458
    %1236 = vmatpush.msra.mxu0 %v454
    %1237 = vmatpush.msra.mxu0 %v450
    %1238 = vmatpush.msra.mxu0 %v446
    %1239 = vmatpush.msra.mxu0 %v442
    %1240 = vmatpush.msra.mxu0 %v438
    %1241 = vmatpush.msra.mxu0 %v434
    %1242 = vmatpush.msra.mxu0 %v430
    %1243 = vmatpush.msra.mxu0 %v426
    %1244 = vmatpush.msra.mxu0 %v422
    %1245 = vmatpush.msra.mxu0 %v418
    %1246 = vmatpush.msra.mxu0 %v414
    %1247 = vmatpush.msra.mxu0 %v410
    %1248 = vmatpush.msra.mxu0 %v406
    %1249 = vmatpush.msra.mxu0 %v402
    %1250 = vmatmul.f32.gmra.mxu0 %v1224
    %v1251 = vpop.f32.mrf.mxu0
    %v1252 = vadd.f32 %v1230, %v1251
    %1253 = vdwg.mxu0
    %1254 = vmatpush.msra.mxu0 %v463
    %1255 = vmatpush.msra.mxu0 %v459
    %1256 = vmatpush.msra.mxu0 %v455
    %1257 = vmatpush.msra.mxu0 %v451
    %1258 = vmatpush.msra.mxu0 %v447
    %1259 = vmatpush.msra.mxu0 %v443
    %1260 = vmatpush.msra.mxu0 %v439
    %1261 = vmatpush.msra.mxu0 %v435
    %1262 = vmatpush.msra.mxu0 %v431
    %1263 = vmatpush.msra.mxu0 %v427
    %1264 = vmatpush.msra.mxu0 %v423
    %1265 = vmatpush.msra.mxu0 %v419
    %1266 = vmatpush.msra.mxu0 %v415
    %1267 = vmatpush.msra.mxu0 %v411
    %1268 = vmatpush.msra.mxu0 %v407
    %1269 = vmatpush.msra.mxu0 %v403
    %1270 = vmatmul.f32.gmra.mxu0 %v1224
    %v1271 = vpop.f32.mrf.mxu0
    %v1272 = vadd.f32 %v1231, %v1271
    %1273 = vdwg.mxu0
    %1274 = vmatpush.msra.mxu0 %v464
    %1275 = vmatpush.msra.mxu0 %v460
    %1276 = vmatpush.msra.mxu0 %v456
    %1277 = vmatpush.msra.mxu0 %v452
    %1278 = vmatpush.msra.mxu0 %v448
    %1279 = vmatpush.msra.mxu0 %v444
    %1280 = vmatpush.msra.mxu0 %v440
    %1281 = vmatpush.msra.mxu0 %v436
    %1282 = vmatpush.msra.mxu0 %v432
    %1283 = vmatpush.msra.mxu0 %v428
    %1284 = vmatpush.msra.mxu0 %v424
    %1285 = vmatpush.msra.mxu0 %v420
    %1286 = vmatpush.msra.mxu0 %v416
    %1287 = vmatpush.msra.mxu0 %v412
    %1288 = vmatpush.msra.mxu0 %v408
    %1289 = vmatpush.msra.mxu0 %v404
    %1290 = vmatmul.f32.gmra.mxu0 %v1224
    %v1291 = vpop.f32.mrf.mxu0
    %v1292 = vadd.f32 %v1232, %v1291
    %1293 = vdwg.mxu0
    %1294 = vmatpush.msra.mxu0 %v465
    %1295 = vmatpush.msra.mxu0 %v461
    %1296 = vmatpush.msra.mxu0 %v457
    %1297 = vmatpush.msra.mxu0 %v453
    %1298 = vmatpush.msra.mxu0 %v449
    %1299 = vmatpush.msra.mxu0 %v445
    %1300 = vmatpush.msra.mxu0 %v441
    %1301 = vmatpush.msra.mxu0 %v437
    %1302 = vmatpush.msra.mxu0 %v433
    %1303 = vmatpush.msra.mxu0 %v429
    %1304 = vmatpush.msra.mxu0 %v425
    %1305 = vmatpush.msra.mxu0 %v421
    %1306 = vmatpush.msra.mxu0 %v417
    %1307 = vmatpush.msra.mxu0 %v413
    %1308 = vmatpush.msra.mxu0 %v409
    %1309 = vmatpush.msra.mxu0 %v405
    %1310 = vmatmul.f32.gmra.mxu0 %v1224
    %v1311 = vpop.f32.mrf.mxu0
    %v1312 = vadd.f32 %v1233, %v1311
    %1313 = vdwg.mxu0
    %v1314 = vxor.u32 %v1252, 2147483648
    %v1315 = vmul.f32 %v1314, 1.442695
    %v1316 = vpow.pop %v1315
    %v1317 = vadd.f32 %v1316, 1.0
    %v1318 = vrcp.pop %v1317
    %v1319 = vmul.f32 %v1317, %v1318
    %v1320 = vsub.f32 1.0, %v1319
    %v1321 = vmul.f32 %v1318, %v1320
    %v1322 = vadd.f32 %v1318, %v1321
    %vm1323 = vweird.f32 %v1317
    %vm1324 = vweird.f32 %v1318
    %vm1325 = vmor %vm1323, %vm1324
    %v1326 = vsel %vm1325, %v1318, %v1322
    %v1327 = vand.u32 2147483647, %v1317
    %vm1328 = vcmp.eq.f32.partialorder %v1327, 8.507059e+37
    %v1329 = vand.u32 %v1317, 2147483648
    %v1330 = vor.u32 1.1754944e-38, %v1329
    %v1331 = vsel %vm1328, %v1330, %v1326
    %v1332 = vmul.f32 1.0, %v1331
    %v1333 = vxor.u32 %v1272, 2147483648
    %v1334 = vmul.f32 %v1333, 1.442695
    %v1335 = vpow.pop %v1334
    %v1336 = vadd.f32 %v1335, 1.0
    %v1337 = vrcp.pop %v1336
    %v1338 = vmul.f32 %v1336, %v1337
    %v1339 = vsub.f32 1.0, %v1338
    %v1340 = vmul.f32 %v1337, %v1339
    %v1341 = vadd.f32 %v1337, %v1340
    %vm1342 = vweird.f32 %v1336
    %vm1343 = vweird.f32 %v1337
    %vm1344 = vmor %vm1342, %vm1343
    %v1345 = vsel %vm1344, %v1337, %v1341
    %v1346 = vand.u32 2147483647, %v1336
    %vm1347 = vcmp.eq.f32.partialorder %v1346, 8.507059e+37
    %v1348 = vand.u32 %v1336, 2147483648
    %v1349 = vor.u32 1.1754944e-38, %v1348
    %v1350 = vsel %vm1347, %v1349, %v1345
    %v1351 = vmul.f32 1.0, %v1350
    %v1352 = vtanh.pop %v1292
    %v1353 = vxor.u32 %v1312, 2147483648
    %v1354 = vmul.f32 %v1353, 1.442695
    %v1355 = vpow.pop %v1354
    %v1356 = vadd.f32 %v1355, 1.0
    %v1357 = vrcp.pop %v1356
    %v1358 = vmul.f32 %v1356, %v1357
    %v1359 = vsub.f32 1.0, %v1358
    %v1360 = vmul.f32 %v1357, %v1359
    %v1361 = vadd.f32 %v1357, %v1360
    %vm1362 = vweird.f32 %v1356
    %vm1363 = vweird.f32 %v1357
    %vm1364 = vmor %vm1362, %vm1363
    %v1365 = vsel %vm1364, %v1357, %v1361
    %v1366 = vand.u32 2147483647, %v1356
    %vm1367 = vcmp.eq.f32.partialorder %v1366, 8.507059e+37
    %v1368 = vand.u32 %v1356, 2147483648
    %v1369 = vor.u32 1.1754944e-38, %v1368
    %v1370 = vsel %vm1367, %v1369, %v1365
    %v1371 = vmul.f32 1.0, %v1370
    %v1372 = vmul.f32 %v1351, %v1222
    %v1373 = vmul.f32 %v1332, %v1352
    %v1374 = vadd.f32 %v1372, %v1373
    %v1375 = vtanh.pop %v1374
    %v1376 = vmul.f32 %v1371, %v1375
    %s1377 = scalar_lea.vmem [#allocation3], 40
    %1378 = vst [vmem:[%s1377] sm:$0xff] %v1376
    %s1379 = smul.u32 6, 4
    %s1380 = smul.addr %s1379, 8
    %s1381 = scalar_lea.vmem [#allocation2], %s1380
    %v1382 = vld [vmem:[%s1381] sm:$0xff]
    %v1383 = vld [vmem:[%s1381 + $0x8] sm:$0xff]
    %v1384 = vld [vmem:[%s1381 + $0x10] sm:$0xff]
    %v1385 = vld [vmem:[%s1381 + $0x18] sm:$0xff]
    %1386 = vmatpush.msra.mxu0 %v462
    %1387 = vmatpush.msra.mxu0 %v458
    %1388 = vmatpush.msra.mxu0 %v454
    %1389 = vmatpush.msra.mxu0 %v450
    %1390 = vmatpush.msra.mxu0 %v446
    %1391 = vmatpush.msra.mxu0 %v442
    %1392 = vmatpush.msra.mxu0 %v438
    %1393 = vmatpush.msra.mxu0 %v434
    %1394 = vmatpush.msra.mxu0 %v430
    %1395 = vmatpush.msra.mxu0 %v426
    %1396 = vmatpush.msra.mxu0 %v422
    %1397 = vmatpush.msra.mxu0 %v418
    %1398 = vmatpush.msra.mxu0 %v414
    %1399 = vmatpush.msra.mxu0 %v410
    %1400 = vmatpush.msra.mxu0 %v406
    %1401 = vmatpush.msra.mxu0 %v402
    %1402 = vmatmul.f32.gmra.mxu0 %v1376
    %v1403 = vpop.f32.mrf.mxu0
    %v1404 = vadd.f32 %v1382, %v1403
    %1405 = vdwg.mxu0
    %1406 = vmatpush.msra.mxu0 %v463
    %1407 = vmatpush.msra.mxu0 %v459
    %1408 = vmatpush.msra.mxu0 %v455
    %1409 = vmatpush.msra.mxu0 %v451
    %1410 = vmatpush.msra.mxu0 %v447
    %1411 = vmatpush.msra.mxu0 %v443
    %1412 = vmatpush.msra.mxu0 %v439
    %1413 = vmatpush.msra.mxu0 %v435
    %1414 = vmatpush.msra.mxu0 %v431
    %1415 = vmatpush.msra.mxu0 %v427
    %1416 = vmatpush.msra.mxu0 %v423
    %1417 = vmatpush.msra.mxu0 %v419
    %1418 = vmatpush.msra.mxu0 %v415
    %1419 = vmatpush.msra.mxu0 %v411
    %1420 = vmatpush.msra.mxu0 %v407
    %1421 = vmatpush.msra.mxu0 %v403
    %1422 = vmatmul.f32.gmra.mxu0 %v1376
    %v1423 = vpop.f32.mrf.mxu0
    %v1424 = vadd.f32 %v1383, %v1423
    %1425 = vdwg.mxu0
    %1426 = vmatpush.msra.mxu0 %v464
    %1427 = vmatpush.msra.mxu0 %v460
    %1428 = vmatpush.msra.mxu0 %v456
    %1429 = vmatpush.msra.mxu0 %v452
    %1430 = vmatpush.msra.mxu0 %v448
    %1431 = vmatpush.msra.mxu0 %v444
    %1432 = vmatpush.msra.mxu0 %v440
    %1433 = vmatpush.msra.mxu0 %v436
    %1434 = vmatpush.msra.mxu0 %v432
    %1435 = vmatpush.msra.mxu0 %v428
    %1436 = vmatpush.msra.mxu0 %v424
    %1437 = vmatpush.msra.mxu0 %v420
    %1438 = vmatpush.msra.mxu0 %v416
    %1439 = vmatpush.msra.mxu0 %v412
    %1440 = vmatpush.msra.mxu0 %v408
    %1441 = vmatpush.msra.mxu0 %v404
    %1442 = vmatmul.f32.gmra.mxu0 %v1376
    %v1443 = vpop.f32.mrf.mxu0
    %v1444 = vadd.f32 %v1384, %v1443
    %1445 = vdwg.mxu0
    %1446 = vmatpush.msra.mxu0 %v465
    %1447 = vmatpush.msra.mxu0 %v461
    %1448 = vmatpush.msra.mxu0 %v457
    %1449 = vmatpush.msra.mxu0 %v453
    %1450 = vmatpush.msra.mxu0 %v449
    %1451 = vmatpush.msra.mxu0 %v445
    %1452 = vmatpush.msra.mxu0 %v441
    %1453 = vmatpush.msra.mxu0 %v437
    %1454 = vmatpush.msra.mxu0 %v433
    %1455 = vmatpush.msra.mxu0 %v429
    %1456 = vmatpush.msra.mxu0 %v425
    %1457 = vmatpush.msra.mxu0 %v421
    %1458 = vmatpush.msra.mxu0 %v417
    %1459 = vmatpush.msra.mxu0 %v413
    %1460 = vmatpush.msra.mxu0 %v409
    %1461 = vmatpush.msra.mxu0 %v405
    %1462 = vmatmul.f32.gmra.mxu0 %v1376
    %v1463 = vpop.f32.mrf.mxu0
    %v1464 = vadd.f32 %v1385, %v1463
    %1465 = vdwg.mxu0
    %v1466 = vxor.u32 %v1404, 2147483648
    %v1467 = vmul.f32 %v1466, 1.442695
    %v1468 = vpow.pop %v1467
    %v1469 = vadd.f32 %v1468, 1.0
    %v1470 = vrcp.pop %v1469
    %v1471 = vmul.f32 %v1469, %v1470
    %v1472 = vsub.f32 1.0, %v1471
    %v1473 = vmul.f32 %v1470, %v1472
    %v1474 = vadd.f32 %v1470, %v1473
    %vm1475 = vweird.f32 %v1469
    %vm1476 = vweird.f32 %v1470
    %vm1477 = vmor %vm1475, %vm1476
    %v1478 = vsel %vm1477, %v1470, %v1474
    %v1479 = vand.u32 2147483647, %v1469
    %vm1480 = vcmp.eq.f32.partialorder %v1479, 8.507059e+37
    %v1481 = vand.u32 %v1469, 2147483648
    %v1482 = vor.u32 1.1754944e-38, %v1481
    %v1483 = vsel %vm1480, %v1482, %v1478
    %v1484 = vmul.f32 1.0, %v1483
    %v1485 = vxor.u32 %v1424, 2147483648
    %v1486 = vmul.f32 %v1485, 1.442695
    %v1487 = vpow.pop %v1486
    %v1488 = vadd.f32 %v1487, 1.0
    %v1489 = vrcp.pop %v1488
    %v1490 = vmul.f32 %v1488, %v1489
    %v1491 = vsub.f32 1.0, %v1490
    %v1492 = vmul.f32 %v1489, %v1491
    %v1493 = vadd.f32 %v1489, %v1492
    %vm1494 = vweird.f32 %v1488
    %vm1495 = vweird.f32 %v1489
    %vm1496 = vmor %vm1494, %vm1495
    %v1497 = vsel %vm1496, %v1489, %v1493
    %v1498 = vand.u32 2147483647, %v1488
    %vm1499 = vcmp.eq.f32.partialorder %v1498, 8.507059e+37
    %v1500 = vand.u32 %v1488, 2147483648
    %v1501 = vor.u32 1.1754944e-38, %v1500
    %v1502 = vsel %vm1499, %v1501, %v1497
    %v1503 = vmul.f32 1.0, %v1502
    %v1504 = vtanh.pop %v1444
    %v1505 = vxor.u32 %v1464, 2147483648
    %v1506 = vmul.f32 %v1505, 1.442695
    %v1507 = vpow.pop %v1506
    %v1508 = vadd.f32 %v1507, 1.0
    %v1509 = vrcp.pop %v1508
    %v1510 = vmul.f32 %v1508, %v1509
    %v1511 = vsub.f32 1.0, %v1510
    %v1512 = vmul.f32 %v1509, %v1511
    %v1513 = vadd.f32 %v1509, %v1512
    %vm1514 = vweird.f32 %v1508
    %vm1515 = vweird.f32 %v1509
    %vm1516 = vmor %vm1514, %vm1515
    %v1517 = vsel %vm1516, %v1509, %v1513
    %v1518 = vand.u32 2147483647, %v1508
    %vm1519 = vcmp.eq.f32.partialorder %v1518, 8.507059e+37
    %v1520 = vand.u32 %v1508, 2147483648
    %v1521 = vor.u32 1.1754944e-38, %v1520
    %v1522 = vsel %vm1519, %v1521, %v1517
    %v1523 = vmul.f32 1.0, %v1522
    %v1524 = vmul.f32 %v1503, %v1374
    %v1525 = vmul.f32 %v1484, %v1504
    %v1526 = vadd.f32 %v1524, %v1525
    %v1527 = vtanh.pop %v1526
    %v1528 = vmul.f32 %v1523, %v1527
    %s1529 = scalar_lea.vmem [#allocation3], 48
    %1530 = vst [vmem:[%s1529] sm:$0xff] %v1528
    %s1531 = smul.u32 7, 4
    %s1532 = smul.addr %s1531, 8
    %s1533 = scalar_lea.vmem [#allocation2], %s1532
    %v1534 = vld [vmem:[%s1533] sm:$0xff]
    %v1535 = vld [vmem:[%s1533 + $0x8] sm:$0xff]
    %v1536 = vld [vmem:[%s1533 + $0x10] sm:$0xff]
    %v1537 = vld [vmem:[%s1533 + $0x18] sm:$0xff]
    %1538 = vmatpush.msra.mxu0 %v462
    %1539 = vmatpush.msra.mxu0 %v458
    %1540 = vmatpush.msra.mxu0 %v454
    %1541 = vmatpush.msra.mxu0 %v450
    %1542 = vmatpush.msra.mxu0 %v446
    %1543 = vmatpush.msra.mxu0 %v442
    %1544 = vmatpush.msra.mxu0 %v438
    %1545 = vmatpush.msra.mxu0 %v434
    %1546 = vmatpush.msra.mxu0 %v430
    %1547 = vmatpush.msra.mxu0 %v426
    %1548 = vmatpush.msra.mxu0 %v422
    %1549 = vmatpush.msra.mxu0 %v418
    %1550 = vmatpush.msra.mxu0 %v414
    %1551 = vmatpush.msra.mxu0 %v410
    %1552 = vmatpush.msra.mxu0 %v406
    %1553 = vmatpush.msra.mxu0 %v402
    %1554 = vmatmul.f32.gmra.mxu0 %v1528
    %v1555 = vpop.f32.mrf.mxu0
    %v1556 = vadd.f32 %v1534, %v1555
    %1557 = vdwg.mxu0
    %1558 = vmatpush.msra.mxu0 %v463
    %1559 = vmatpush.msra.mxu0 %v459
    %1560 = vmatpush.msra.mxu0 %v455
    %1561 = vmatpush.msra.mxu0 %v451
    %1562 = vmatpush.msra.mxu0 %v447
    %1563 = vmatpush.msra.mxu0 %v443
    %1564 = vmatpush.msra.mxu0 %v439
    %1565 = vmatpush.msra.mxu0 %v435
    %1566 = vmatpush.msra.mxu0 %v431
    %1567 = vmatpush.msra.mxu0 %v427
    %1568 = vmatpush.msra.mxu0 %v423
    %1569 = vmatpush.msra.mxu0 %v419
    %1570 = vmatpush.msra.mxu0 %v415
    %1571 = vmatpush.msra.mxu0 %v411
    %1572 = vmatpush.msra.mxu0 %v407
    %1573 = vmatpush.msra.mxu0 %v403
    %1574 = vmatmul.f32.gmra.mxu0 %v1528
    %v1575 = vpop.f32.mrf.mxu0
    %v1576 = vadd.f32 %v1535, %v1575
    %1577 = vdwg.mxu0
    %1578 = vmatpush.msra.mxu0 %v464
    %1579 = vmatpush.msra.mxu0 %v460
    %1580 = vmatpush.msra.mxu0 %v456
    %1581 = vmatpush.msra.mxu0 %v452
    %1582 = vmatpush.msra.mxu0 %v448
    %1583 = vmatpush.msra.mxu0 %v444
    %1584 = vmatpush.msra.mxu0 %v440
    %1585 = vmatpush.msra.mxu0 %v436
    %1586 = vmatpush.msra.mxu0 %v432
    %1587 = vmatpush.msra.mxu0 %v428
    %1588 = vmatpush.msra.mxu0 %v424
    %1589 = vmatpush.msra.mxu0 %v420
    %1590 = vmatpush.msra.mxu0 %v416
    %1591 = vmatpush.msra.mxu0 %v412
    %1592 = vmatpush.msra.mxu0 %v408
    %1593 = vmatpush.msra.mxu0 %v404
    %1594 = vmatmul.f32.gmra.mxu0 %v1528
    %v1595 = vpop.f32.mrf.mxu0
    %v1596 = vadd.f32 %v1536, %v1595
    %1597 = vdwg.mxu0
    %1598 = vmatpush.msra.mxu0 %v465
    %1599 = vmatpush.msra.mxu0 %v461
    %1600 = vmatpush.msra.mxu0 %v457
    %1601 = vmatpush.msra.mxu0 %v453
    %1602 = vmatpush.msra.mxu0 %v449
    %1603 = vmatpush.msra.mxu0 %v445
    %1604 = vmatpush.msra.mxu0 %v441
    %1605 = vmatpush.msra.mxu0 %v437
    %1606 = vmatpush.msra.mxu0 %v433
    %1607 = vmatpush.msra.mxu0 %v429
    %1608 = vmatpush.msra.mxu0 %v425
    %1609 = vmatpush.msra.mxu0 %v421
    %1610 = vmatpush.msra.mxu0 %v417
    %1611 = vmatpush.msra.mxu0 %v413
    %1612 = vmatpush.msra.mxu0 %v409
    %1613 = vmatpush.msra.mxu0 %v405
    %1614 = vmatmul.f32.gmra.mxu0 %v1528
    %v1615 = vpop.f32.mrf.mxu0
    %v1616 = vadd.f32 %v1537, %v1615
    %1617 = vdwg.mxu0
    %v1618 = vxor.u32 %v1556, 2147483648
    %v1619 = vmul.f32 %v1618, 1.442695
    %v1620 = vpow.pop %v1619
    %v1621 = vadd.f32 %v1620, 1.0
    %v1622 = vrcp.pop %v1621
    %v1623 = vmul.f32 %v1621, %v1622
    %v1624 = vsub.f32 1.0, %v1623
    %v1625 = vmul.f32 %v1622, %v1624
    %v1626 = vadd.f32 %v1622, %v1625
    %vm1627 = vweird.f32 %v1621
    %vm1628 = vweird.f32 %v1622
    %vm1629 = vmor %vm1627, %vm1628
    %v1630 = vsel %vm1629, %v1622, %v1626
    %v1631 = vand.u32 2147483647, %v1621
    %vm1632 = vcmp.eq.f32.partialorder %v1631, 8.507059e+37
    %v1633 = vand.u32 %v1621, 2147483648
    %v1634 = vor.u32 1.1754944e-38, %v1633
    %v1635 = vsel %vm1632, %v1634, %v1630
    %v1636 = vmul.f32 1.0, %v1635
    %v1637 = vxor.u32 %v1576, 2147483648
    %v1638 = vmul.f32 %v1637, 1.442695
    %v1639 = vpow.pop %v1638
    %v1640 = vadd.f32 %v1639, 1.0
    %v1641 = vrcp.pop %v1640
    %v1642 = vmul.f32 %v1640, %v1641
    %v1643 = vsub.f32 1.0, %v1642
    %v1644 = vmul.f32 %v1641, %v1643
    %v1645 = vadd.f32 %v1641, %v1644
    %vm1646 = vweird.f32 %v1640
    %vm1647 = vweird.f32 %v1641
    %vm1648 = vmor %vm1646, %vm1647
    %v1649 = vsel %vm1648, %v1641, %v1645
    %v1650 = vand.u32 2147483647, %v1640
    %vm1651 = vcmp.eq.f32.partialorder %v1650, 8.507059e+37
    %v1652 = vand.u32 %v1640, 2147483648
    %v1653 = vor.u32 1.1754944e-38, %v1652
    %v1654 = vsel %vm1651, %v1653, %v1649
    %v1655 = vmul.f32 1.0, %v1654
    %v1656 = vtanh.pop %v1596
    %v1657 = vxor.u32 %v1616, 2147483648
    %v1658 = vmul.f32 %v1657, 1.442695
    %v1659 = vpow.pop %v1658
    %v1660 = vadd.f32 %v1659, 1.0
    %v1661 = vrcp.pop %v1660
    %v1662 = vmul.f32 %v1660, %v1661
    %v1663 = vsub.f32 1.0, %v1662
    %v1664 = vmul.f32 %v1661, %v1663
    %v1665 = vadd.f32 %v1661, %v1664
    %vm1666 = vweird.f32 %v1660
    %vm1667 = vweird.f32 %v1661
    %vm1668 = vmor %vm1666, %vm1667
    %v1669 = vsel %vm1668, %v1661, %v1665
    %v1670 = vand.u32 2147483647, %v1660
    %vm1671 = vcmp.eq.f32.partialorder %v1670, 8.507059e+37
    %v1672 = vand.u32 %v1660, 2147483648
    %v1673 = vor.u32 1.1754944e-38, %v1672
    %v1674 = vsel %vm1671, %v1673, %v1669
    %v1675 = vmul.f32 1.0, %v1674
    %v1676 = vmul.f32 %v1655, %v1526
    %v1677 = vmul.f32 %v1636, %v1656
    %v1678 = vadd.f32 %v1676, %v1677
    %v1679 = vtanh.pop %v1678
    %v1680 = vmul.f32 %v1675, %v1679
    %s1681 = scalar_lea.vmem [#allocation3], 56
    %1682 = vst [vmem:[%s1681] sm:$0xff] %v1680
    %1683 = vst [vmem:[#allocation16] sm:$0xff] %v1680
    %1684 = vst [vmem:[#allocation18] sm:$0xff] %v1678
    %v1685 = vld [vmem:[#allocation3] sm:$0xff]
    %v1686 = vld [vmem:[#allocation3 + $0x8] sm:$0xff]
    %v1687 = vld [vmem:[#allocation3 + $0x10] sm:$0xff]
    %v1688 = vld [vmem:[#allocation3 + $0x18] sm:$0xff]
    %v1689 = vld [vmem:[#allocation3 + $0x20] sm:$0xff]
    %v1690 = vld [vmem:[#allocation3 + $0x28] sm:$0xff]
    %v1691 = vld [vmem:[#allocation3 + $0x30] sm:$0xff]
    %v1692 = vld [vmem:[#allocation3 + $0x38] sm:$0xff]
    %v1693 = vld [vmem:[#allocation13] sm:$0xff]
    %v1694 = vld [vmem:[#allocation13 + $0x8] sm:$0xff]
    %v1695 = vld [vmem:[#allocation13 + $0x10] sm:$0xff]
    %v1696 = vld [vmem:[#allocation13 + $0x18] sm:$0xff]
    %v1697 = vld [vmem:[#allocation13 + $0x20] sm:$0xff]
    %v1698 = vld [vmem:[#allocation13 + $0x28] sm:$0xff]
    %v1699 = vld [vmem:[#allocation13 + $0x30] sm:$0xff]
    %v1700 = vld [vmem:[#allocation13 + $0x38] sm:$0xff]
    %v1701 = vld [vmem:[#allocation13 + $0x40] sm:$0xff]
    %v1702 = vld [vmem:[#allocation13 + $0x48] sm:$0xff]
    %v1703 = vld [vmem:[#allocation13 + $0x50] sm:$0xff]
    %v1704 = vld [vmem:[#allocation13 + $0x58] sm:$0xff]
    %v1705 = vld [vmem:[#allocation13 + $0x60] sm:$0xff]
    %v1706 = vld [vmem:[#allocation13 + $0x68] sm:$0xff]
    %v1707 = vld [vmem:[#allocation13 + $0x70] sm:$0xff]
    %v1708 = vld [vmem:[#allocation13 + $0x78] sm:$0xff]
    %v1709 = vld [vmem:[%s7] sm:$0x1]
    %v1711 = vperm.slane %v1709, 0
    %1713 = vmatpush.msra.mxu0 %v1708
    %1714 = vmatpush.msra.mxu0 %v1707
    %1715 = vmatpush.msra.mxu0 %v1706
    %1716 = vmatpush.msra.mxu0 %v1705
    %1717 = vmatpush.msra.mxu0 %v1704
    %1718 = vmatpush.msra.mxu0 %v1703
    %1719 = vmatpush.msra.mxu0 %v1702
    %1720 = vmatpush.msra.mxu0 %v1701
    %1721 = vmatpush.msra.mxu0 %v1700
    %1722 = vmatpush.msra.mxu0 %v1699
    %1723 = vmatpush.msra.mxu0 %v1698
    %1724 = vmatpush.msra.mxu0 %v1697
    %1725 = vmatpush.msra.mxu0 %v1696
    %1726 = vmatpush.msra.mxu0 %v1695
    %1727 = vmatpush.msra.mxu0 %v1694
    %1728 = vmatpush.msra.mxu0 %v1693
    %1729 = vmatmul.f32.gmra.mxu0 %v1685
    %v1730 = vpop.f32.mrf.mxu0
    %v1731 = vadd.f32 %v1711, %v1730
    %1732 = vmatmul.f32.gmra.mxu0 %v1686
    %v1733 = vpop.f32.mrf.mxu0
    %v1734 = vadd.f32 %v1711, %v1733
    %1735 = vmatmul.f32.gmra.mxu0 %v1687
    %v1736 = vpop.f32.mrf.mxu0
    %v1737 = vadd.f32 %v1711, %v1736
    %1738 = vmatmul.f32.gmra.mxu0 %v1688
    %v1739 = vpop.f32.mrf.mxu0
    %v1740 = vadd.f32 %v1711, %v1739
    %1741 = vmatmul.f32.gmra.mxu0 %v1689
    %v1742 = vpop.f32.mrf.mxu0
    %v1743 = vadd.f32 %v1711, %v1742
    %1744 = vmatmul.f32.gmra.mxu0 %v1690
    %v1745 = vpop.f32.mrf.mxu0
    %v1746 = vadd.f32 %v1711, %v1745
    %1747 = vmatmul.f32.gmra.mxu0 %v1691
    %v1748 = vpop.f32.mrf.mxu0
    %v1749 = vadd.f32 %v1711, %v1748
    %1750 = vmatmul.f32.gmra.mxu0 %v1692
    %v1751 = vpop.f32.mrf.mxu0
    %v1752 = vadd.f32 %v1711, %v1751
    %1753 = vdwg.mxu0
    %1754 = vst [vmem:[#allocation15] sm:$0xff] %v1731
    %1755 = vst [vmem:[#allocation15 + $0x8] sm:$0xff] %v1734
    %1756 = vst [vmem:[#allocation15 + $0x10] sm:$0xff] %v1737
    %1757 = vst [vmem:[#allocation15 + $0x18] sm:$0xff] %v1740
    %1758 = vst [vmem:[#allocation15 + $0x20] sm:$0xff] %v1743
    %1759 = vst [vmem:[#allocation15 + $0x28] sm:$0xff] %v1746
    %1760 = vst [vmem:[#allocation15 + $0x30] sm:$0xff] %v1749
    %1761 = vst [vmem:[#allocation15 + $0x38] sm:$0xff] %v1752
    // Predicated region
    $region58: #{tpu_custom_call.1} parent=1 // pred_check
      _
    $region59: #{tpu_custom_call.1} parent=1 // pred_check_branch
      %1763 = sbr.rel (0) target = $region61
    $region60: #{tpu_custom_call.1} parent=1 // pred_region
      %1765 = vsyncadd [#allocation6], 0
      %s1766 = sshll.u32 [#allocation15], 4
      %s1767 = int_to_ptr.vmem [resolvable:$true] %s1766
      %s1768 = sshll.u32 %s8, 4
      %s1769 = int_to_ptr.hbm [resolvable:$true] %s1768
      %1774 = dma.vmem_to_hbm [thread:$0]  %s1767, 1024, %s1769, [#allocation6], 128, 128, 8
    $region61: #{tpu_custom_call.1} parent=1 // pred_fallthru
      _
    // Predicated region
    $region62: #{tpu_custom_call.1} parent=1 // pred_check
      _
    $region63: #{tpu_custom_call.1} parent=1 // pred_check_branch
      %1776 = sbr.rel (0) target = $region65
    $region64: #{tpu_custom_call.1} parent=1 // pred_region
      %1778 = vsyncadd [#allocation17], 0
      %s1780 = sshll.u32 [#allocation16], 4
      %s1781 = int_to_ptr.vmem [resolvable:$true] %s1780
      %s1782 = sshll.u32 %s9, 4
      %s1783 = int_to_ptr.hbm [resolvable:$true] %s1782
      %1785 = dma.vmem_to_hbm [thread:$0]  %s1781, 128, %s1783, [#allocation17]
    $region65: #{tpu_custom_call.1} parent=1 // pred_fallthru
      _
    // Predicated region
    $region66: #{tpu_custom_call.1} parent=1 // pred_check
      _
    $region67: #{tpu_custom_call.1} parent=1 // pred_check_branch
      %1787 = sbr.rel (0) target = $region69
    $region68: #{tpu_custom_call.1} parent=1 // pred_region
      %1789 = vsyncadd [#allocation17], 0
      %s1791 = sshll.u32 [#allocation18], 4
      %s1792 = int_to_ptr.vmem [resolvable:$true] %s1791
      %s1793 = sshll.u32 %s10, 4
      %s1794 = int_to_ptr.hbm [resolvable:$true] %s1793
      %1796 = dma.vmem_to_hbm [thread:$0]  %s1792, 128, %s1794, [#allocation17]
    $region69: #{tpu_custom_call.1} parent=1 // pred_fallthru
      _
    // Predicated region
    $region70: #{tpu_custom_call.1} parent=1 // pred_check
      _
    $region71: #{tpu_custom_call.1} parent=1 // pred_check_branch
      %1798 = sbr.rel (0) target = $region73
    $region72: #{tpu_custom_call.1} parent=1 // pred_region
      %1800 = dma.done [#allocation6], 1024
    $region73: #{tpu_custom_call.1} parent=1 // pred_fallthru
      _
    // Predicated region
    $region74: #{tpu_custom_call.1} parent=1 // pred_check
      _
    $region75: #{tpu_custom_call.1} parent=1 // pred_check_branch
      %1802 = sbr.rel (0) target = $region77
    $region76: #{tpu_custom_call.1} parent=1 // pred_region
      %1804 = dma.done [#allocation17], 128
    $region77: #{tpu_custom_call.1} parent=1 // pred_fallthru
      _
    // Predicated region
    $region78: #{tpu_custom_call.1} parent=1 // pred_check
      _
    $region79: #{tpu_custom_call.1} parent=1 // pred_check_branch
      %1806 = sbr.rel (0) target = $region81
    $region80: #{tpu_custom_call.1} parent=1 // pred_region
      %1808 = dma.done [#allocation17], 128
    $region81: #{tpu_custom_call.1} parent=1 // pred_fallthru
      _
    %1809 = vsyncpa [#allocation5], 1
    %1810 = vsyncpa [#allocation8], 1
    %1811 = vsyncpa [#allocation11], 1
    %1812 = vsyncpa [#allocation14], 1
    %1813 = vsyncpa [#allocation6], 1
    %1814 = vsyncpa [#allocation17], 1

</llo_original>
